<compile_context>
chip_gen: v5e
topology: v5e:2x2
jax: 0.10.0
libtpu: 0.0.40
codegen_flags: <defaults>
</compile_context>

<pallas_src>
import jax
import jax.numpy as jnp
import numpy as np
from jax import lax
from jax.experimental import pallas as pl
from jax.experimental.pallas import tpu as pltpu


def _round_up(x, m):
    return ((x + m - 1) // m) * m


# ----------------------- Kernel 1: GRU + attention -> proj -------------------
def narm_gru_attn_kernel(embs_ref, len_ref,
                         w_ih_ref, w_hh_ref,          # (E, 3H), (H, 3H) fused, pre-transposed
                         b_ih_ref, b_hh_ref,          # (1, 3H), (1, 3H)
                         a1_t_ref, a2_t_ref, vt_row_ref,   # (H, H), (H, H), (1, H)
                         bw_top_ref, bw_bot_ref,      # (H, E), (H, E)  == split of b.weight
                         proj_ref,                    # out: (Bt, E)
                         h_scr, xg_scr, gru_scr):     # scratch: (Bt,H), (T,Bt,3H), (T,Bt,H)
    T, Bt, E = embs_ref.shape
    H = h_scr.shape[-1]

    # ---- hoisted input-side GRU matmul: one big (T*Bt, E) @ (E, 3H) ----
    xg = (jnp.dot(embs_ref[...].reshape(T * Bt, E), w_ih_ref[...],
                  preferred_element_type=jnp.float32)
          + b_ih_ref[...])                                   # (T*Bt, 3H), biases folded once
    xg_scr[...] = xg.reshape(T, Bt, 3 * H)

    h_scr[...] = jnp.zeros_like(h_scr)
    len_col = len_ref[...]                                   # (Bt, 1) int32

    # ---- masked GRU recurrence (== packed GRU over variable lengths) ----
    def step(t, carry):
        h = h_scr[...]                                       # (Bt, H)
        xg_t = xg_scr[t]                                     # (Bt, 3H)
        hg = (jnp.dot(h, w_hh_ref[...], preferred_element_type=jnp.float32)
              + b_hh_ref[...])                               # (Bt, 3H) single fused matmul
        r = jax.nn.sigmoid(xg_t[:, 0:H] + hg[:, 0:H])
        z = jax.nn.sigmoid(xg_t[:, H:2 * H] + hg[:, H:2 * H])
        n = jnp.tanh(xg_t[:, 2 * H:3 * H] + r * hg[:, 2 * H:3 * H])
        h_new = (1.0 - z) * n + z * h
        m = jnp.where(t < len_col, 1.0, 0.0)                 # (Bt, 1), built in-kernel
        h_scr[...] = m * h_new + (1.0 - m) * h               # padded step keeps old hidden
        gru_scr[t] = m * h_new                               # pad_packed -> zeros when padded
        return carry

    lax.fori_loop(0, T, step, 0, unroll=True)                # unrolled: LLO can overlap steps

    # ---- attention ----
    ht = h_scr[...]                                          # (Bt, H) == hidden[-1]
    gru_flat = gru_scr[...].reshape(T * Bt, H)
    q1 = jnp.dot(gru_flat, a1_t_ref[...],
                 preferred_element_type=jnp.float32).reshape(T, Bt, H)
    q2 = jnp.dot(ht, a2_t_ref[...], preferred_element_type=jnp.float32)   # (Bt, H)
    # Attention mask omitted on purpose: padded rows of gru_out are exactly 0,
    # so alpha there multiplies 0 -> c_local is identical to the masked version.
    sig = jax.nn.sigmoid(q1 + q2[None, :, :])                             # (T, Bt, H)
    alpha = jnp.sum(sig * vt_row_ref[...], axis=-1, keepdims=True)        # (T, Bt, 1) VPU/XLU
    c_local = jnp.sum(alpha * gru_scr[...], axis=0)                       # (Bt, H)

    # proj = [c_local, ht] @ b_w   without the lane-dim concat
    proj_ref[...] = (
        jnp.dot(c_local, bw_top_ref[...], preferred_element_type=jnp.float32)
        + jnp.dot(ht, bw_bot_ref[...], preferred_element_type=jnp.float32))   # (Bt, E)


# ------------------- Kernel 2: tiled scores = proj @ items^T -----------------
def narm_scores_kernel(proj_ref, items_ref, scores_ref):
    p = proj_ref[...].astype(items_ref.dtype)     # bf16 MXU operands when items are bf16
    scores_ref[...] = lax.dot_general(
        p, items_ref[...],
        dimension_numbers=(((1,), (1,)), ((), ())),   # contract E of both (no transpose)
        preferred_element_type=jnp.float32)


# --------------------------------- wrapper -----------------------------------
def narm_forward(seq, lengths, params, *, tile_n=1024, item_dtype=jnp.float32):
    """seq: (T, B) int32, padded with 0 (time-major); lengths: (B,) int32."""
    T, B = seq.shape
    emb_table = params["emb"]                        # (n_items, E), row 0 is zero
    n_items, E = emb_table.shape
    H = params["w_hh"].shape[1]

    # ---- batch padding: sublane-friendly batch tiles ----
    tile_b = min(_round_up(B, 8), 256)
    B_pad = _round_up(B, tile_b)

    # ---- glue: embedding lookup (gather stays in plain JAX) ----
    embs = emb_table[seq]                            # (T, B, E)
    if B_pad != B:
        embs = jnp.pad(embs, ((0, 0), (0, B_pad - B), (0, 0)))
        lengths = jnp.pad(lengths, (0, B_pad - B))   # padded rows: length 0 -> all-zero state
    len_col = lengths.astype(jnp.int32).reshape(B_pad, 1)

    # ---- fused / transposed weights (one-time, wrapper level) ----
    w_ih_all = params["w_ih"].T                      # (E, 3H), gate order r|z|n
    w_hh_all = params["w_hh"].T                      # (H, 3H)
    b_ih_row = params["b_ih"].reshape(1, 3 * H)
    b_hh_row = params["b_hh"].reshape(1, 3 * H)
    a1_t = params["a1_w"].T
    a2_t = params["a2_w"].T
    vt_row = params["vt_w"].reshape(1, H)
    bw_top = params["b_w"][:H, :]                    # multiplies c_local
    bw_bot = params["b_w"][H:, :]                    # multiplies ht

    def full_spec(shape):
        n = len(shape)
        return pl.BlockSpec(shape, lambda i, _n=n: (0,) * _n)

    cparams = pltpu.CompilerParams(
        dimension_semantics=("parallel",),
        vmem_limit_bytes=32 * 1024 * 1024)

    # ---- kernel 1: GRU + attention -> proj (B_pad, E) ----
    proj = pl.pallas_call(
        narm_gru_attn_kernel,
        out_shape=jax.ShapeDtypeStruct((B_pad, E), jnp.float32),
        grid=(B_pad // tile_b,),
        in_specs=[
            pl.BlockSpec((T, tile_b, E), lambda i: (0, i, 0)),
            pl.BlockSpec((tile_b, 1), lambda i: (i, 0)),
            full_spec((E, 3 * H)),
            full_spec((H, 3 * H)),
            full_spec((1, 3 * H)),
            full_spec((1, 3 * H)),
            full_spec((H, H)),
            full_spec((H, H)),
            full_spec((1, H)),
            full_spec((H, E)),
            full_spec((H, E)),
        ],
        out_specs=pl.BlockSpec((tile_b, E), lambda i: (i, 0)),
        scratch_shapes=[
            pltpu.VMEM((tile_b, H), jnp.float32),           # hidden state
            pltpu.VMEM((T, tile_b, 3 * H), jnp.float32),    # hoisted input gates
            pltpu.VMEM((T, tile_b, H), jnp.float32),        # gru_out
        ],
        compiler_params=cparams,
    )(embs, len_col, w_ih_all, w_hh_all, b_ih_row, b_hh_row,
      a1_t, a2_t, vt_row, bw_top, bw_bot)

    # ---- kernel 2: streamed item-table GEMM, tiled over n_items ----
    tile_n_eff = min(_round_up(tile_n, 128), _round_up(n_items, 128))
    n_pad = _round_up(n_items, tile_n_eff)
    items = emb_table.astype(item_dtype)
    if n_pad != n_items:
        items = jnp.pad(items, ((0, n_pad - n_items), (0, 0)))

    scores = pl.pallas_call(
        narm_scores_kernel,
        out_shape=jax.ShapeDtypeStruct((B_pad, n_pad), jnp.float32),
        grid=(n_pad // tile_n_eff,),
        in_specs=[
            pl.BlockSpec((B_pad, E), lambda i: (0, 0)),          # resident
            pl.BlockSpec((tile_n_eff, E), lambda i: (i, 0)),     # streamed item tiles
        ],
        out_specs=pl.BlockSpec((B_pad, tile_n_eff), lambda i: (0, i)),
        compiler_params=cparams,
    )(proj, items)

    return scores[:B, :n_items]


# --------------------------- pure-JAX reference ------------------------------
def narm_reference(seq, lengths, params):
    """Mirrors the PyTorch forward exactly (including the attention mask)."""
    emb_table = params["emb"]
    T, B = seq.shape
    H = params["w_hh"].shape[1]
    embs = emb_table[seq]
    t_idx = jnp.arange(T, dtype=jnp.int32)[:, None]
    mask_gru = (t_idx < lengths[None, :]).astype(jnp.float32)[..., None]
    mask_attn = (seq > 0).astype(jnp.float32)[..., None]
    w_ih_t, w_hh_t = params["w_ih"].T, params["w_hh"].T
    b_ih, b_hh = params["b_ih"], params["b_hh"]

    def gru_step(h, inp):
        x, m = inp
        gi = x @ w_ih_t + b_ih
        gh = h @ w_hh_t + b_hh
        r = jax.nn.sigmoid(gi[:, 0:H] + gh[:, 0:H])
        z = jax.nn.sigmoid(gi[:, H:2 * H] + gh[:, H:2 * H])
        n = jnp.tanh(gi[:, 2 * H:] + r * gh[:, 2 * H:])
        h_new = (1.0 - z) * n + z * h
        return m * h_new + (1.0 - m) * h, m * h_new

    ht, gru_out = lax.scan(gru_step, jnp.zeros((B, H), jnp.float32), (embs, mask_gru))
    q2 = ht @ params["a2_w"].T
    q1 = (gru_out.reshape(-1, H) @ params["a1_w"].T).reshape(T, B, H)
    sig = jax.nn.sigmoid(q1 + mask_attn * q2[None, :, :])
    alpha = (sig.reshape(-1, H) @ params["vt_w"].T).reshape(T, B, 1)
    c_local = jnp.sum(alpha * gru_out, axis=0)
    c_t = jnp.concatenate([c_local, ht], axis=-1)
    return (c_t @ params["b_w"]) @ emb_table.T


# --------------------------------- main --------------------------------------
if __name__ == "__main__":
    n_items, E, H = 64, 32, 32
    T, B = 8, 2

    key = jax.random.PRNGKey(0)
    keys = jax.random.split(key, 12)
    scale = 0.1

    def rnd(k, shape):
        return scale * jax.random.normal(k, shape, jnp.float32)

    params = dict(
        emb=rnd(keys[0], (n_items, E)).at[0].set(0.0),   # padding_idx=0
        w_ih=rnd(keys[1], (3 * H, E)),                   # PyTorch GRU weight_ih_l0 (r|z|n)
        w_hh=rnd(keys[2], (3 * H, H)),                   # PyTorch GRU weight_hh_l0
        b_ih=rnd(keys[3], (3 * H,)),
        b_hh=rnd(keys[4], (3 * H,)),
        a1_w=rnd(keys[5], (H, H)),                       # a_1: Linear(H, H, bias=False)
        a2_w=rnd(keys[6], (H, H)),                       # a_2: Linear(H, H, bias=False)
        vt_w=rnd(keys[7], (1, H)),                       # v_t: Linear(H, 1, bias=False)
        b_w=rnd(keys[8], (2 * H, E)),                    # b:   Linear(E, 2H, bias=False)
    )

    # Example session batch: time-major (T, B), padded with item id 0, lengths sorted desc.
    lengths = jnp.array([8, 5], dtype=jnp.int32)
    seq_raw = jax.random.randint(keys[9], (T, B), 1, n_items, dtype=jnp.int32)
    t_idx = jnp.arange(T, dtype=jnp.int32)[:, None]
    seq = jnp.where(t_idx < lengths[None, :], seq_raw, 0)

    ref = jax.block_until_ready(narm_reference(seq, lengths, params))

    # f32 item table (exactness check)
    scores_f32 = jax.block_until_ready(
        narm_forward(seq, lengths, params, item_dtype=jnp.float32))
    np.testing.assert_allclose(np.asarray(scores_f32), np.asarray(ref),
                               rtol=2e-3, atol=2e-3)

    # bf16 item table (halves item-table HBM/VMEM traffic; f32 accumulation kept)
    scores_bf16 = jax.block_until_ready(
        narm_forward(seq, lengths, params, item_dtype=jnp.bfloat16))
    np.testing.assert_allclose(np.asarray(scores_bf16), np.asarray(ref),
                               rtol=2e-2, atol=2e-2)

    print("KERNEL_OK")
</pallas_src>

<mosaic_0001>
module attributes {stable_mosaic.version = 11 : i64} {
  func.func @narm_gru_attn_kernel(%arg0: i32, %arg1: memref<8x8x32xf32, #tpu.memory_space<vmem>>, %arg2: memref<8x1xi32, #tpu.memory_space<vmem>>, %arg3: memref<32x96xf32, #tpu.memory_space<vmem>>, %arg4: memref<32x96xf32, #tpu.memory_space<vmem>>, %arg5: memref<1x96xf32, #tpu.memory_space<vmem>>, %arg6: memref<1x96xf32, #tpu.memory_space<vmem>>, %arg7: memref<32x32xf32, #tpu.memory_space<vmem>>, %arg8: memref<32x32xf32, #tpu.memory_space<vmem>>, %arg9: memref<1x32xf32, #tpu.memory_space<vmem>>, %arg10: memref<32x32xf32, #tpu.memory_space<vmem>>, %arg11: memref<32x32xf32, #tpu.memory_space<vmem>>, %arg12: memref<8x32xf32, #tpu.memory_space<vmem>>, %arg13: memref<8x32xf32, #tpu.memory_space<vmem>>, %arg14: memref<8x8x96xf32, #tpu.memory_space<vmem>>, %arg15: memref<8x8x32xf32, #tpu.memory_space<vmem>>) attributes {dimension_semantics = [#tpu.dimension_semantics<parallel>], iteration_bounds = array<i64: 1>, scalar_prefetch = 0 : i64, scratch_operands = 3 : i64, tpu.core_type = #tpu.core_type<tc>, window_params = [{transform_indices = @transform_0, window_bounds = array<i64: 8, 8, 32>}, {transform_indices = @transform_1, window_bounds = array<i64: 8, 1>}, {pipeline_mode = #tpu.pipeline_mode<synchronous>, transform_indices = @transform_2, window_bounds = array<i64: 32, 96>}, {pipeline_mode = #tpu.pipeline_mode<synchronous>, transform_indices = @transform_3, window_bounds = array<i64: 32, 96>}, {pipeline_mode = #tpu.pipeline_mode<synchronous>, transform_indices = @transform_4, window_bounds = array<i64: 1, 96>}, {pipeline_mode = #tpu.pipeline_mode<synchronous>, transform_indices = @transform_5, window_bounds = array<i64: 1, 96>}, {pipeline_mode = #tpu.pipeline_mode<synchronous>, transform_indices = @transform_6, window_bounds = array<i64: 32, 32>}, {pipeline_mode = #tpu.pipeline_mode<synchronous>, transform_indices = @transform_7, window_bounds = array<i64: 32, 32>}, {pipeline_mode = #tpu.pipeline_mode<synchronous>, transform_indices = @transform_8, window_bounds = array<i64: 1, 32>}, {pipeline_mode = #tpu.pipeline_mode<synchronous>, transform_indices = @transform_9, window_bounds = array<i64: 32, 32>}, {pipeline_mode = #tpu.pipeline_mode<synchronous>, transform_indices = @transform_10, window_bounds = array<i64: 32, 32>}, {transform_indices = @transform_11, window_bounds = array<i64: 8, 32>}]} {
    %c0 = arith.constant 0 : index
    %c0_0 = arith.constant 0 : index
    %c0_1 = arith.constant 0 : index
    %0 = vector.load %arg1[%c0, %c0_0, %c0_1] : memref<8x8x32xf32, #tpu.memory_space<vmem>>, vector<8x8x32xf32>
    %1 = vector.shape_cast %0 : vector<8x8x32xf32> to vector<64x32xf32>
    %c0_2 = arith.constant 0 : index
    %c0_3 = arith.constant 0 : index
    %2 = vector.load %arg3[%c0_2, %c0_3] : memref<32x96xf32, #tpu.memory_space<vmem>>, vector<32x96xf32>
    %cst = arith.constant dense<0.000000e+00> : vector<64x96xf32>
    %3 = tpu.matmul %1, %2, %cst {dimension_numbers = #tpu.dot_dimension_numbers<[1], [0], [0], [1], [0, 0, 1, 1], [], []>} : vector<64x32xf32>, vector<32x96xf32>, vector<64x96xf32> -> vector<64x96xf32>
    %c0_4 = arith.constant 0 : index
    %c0_5 = arith.constant 0 : index
    %4 = vector.load %arg5[%c0_4, %c0_5] : memref<1x96xf32, #tpu.memory_space<vmem>>, vector<1x96xf32>
    %5 = vector.broadcast %4 : vector<1x96xf32> to vector<64x96xf32>
    %6 = arith.addf %3, %5 : vector<64x96xf32>
    %7 = vector.shape_cast %6 : vector<64x96xf32> to vector<8x8x96xf32>
    %c0_6 = arith.constant 0 : index
    %c0_7 = arith.constant 0 : index
    %c0_8 = arith.constant 0 : index
    %8 = vector.load %arg14[%c0_6, %c0_7, %c0_8] : memref<8x8x96xf32, #tpu.memory_space<vmem>>, vector<8x8x96xf32>
    tpu.vector_store %arg14[%c0_6, %c0_7, %c0_8], %7 {strides = array<i32>} : memref<8x8x96xf32, #tpu.memory_space<vmem>>, vector<8x8x96xf32>,
    %cst_9 = arith.constant 0.000000e+00 : f32
    %9 = vector.broadcast %cst_9 : f32 to vector<8x32xf32>
    %c0_10 = arith.constant 0 : index
    %c0_11 = arith.constant 0 : index
    %10 = vector.load %arg13[%c0_10, %c0_11] : memref<8x32xf32, #tpu.memory_space<vmem>>, vector<8x32xf32>
    tpu.vector_store %arg13[%c0_10, %c0_11], %9 {strides = array<i32>} : memref<8x32xf32, #tpu.memory_space<vmem>>, vector<8x32xf32>,
    %c0_12 = arith.constant 0 : index
    %c0_13 = arith.constant 0 : index
    %11 = vector.load %arg2[%c0_12, %c0_13] : memref<8x1xi32, #tpu.memory_space<vmem>>, vector<8x1xi32>
    %c0_i32 = arith.constant 0 : i32
    %c0_14 = arith.constant 0 : index
    %c0_15 = arith.constant 0 : index
    %12 = vector.load %arg13[%c0_14, %c0_15] : memref<8x32xf32, #tpu.memory_space<vmem>>, vector<8x32xf32>
    %13 = arith.index_cast %c0_i32 : i32 to index
    %c0_16 = arith.constant 0 : index
    %c0_17 = arith.constant 0 : index
    %14 = vector.load %arg14[%13, %c0_16, %c0_17] : memref<8x8x96xf32, #tpu.memory_space<vmem>>, vector<1x8x96xf32>
    %15 = vector.shape_cast %14 : vector<1x8x96xf32> to vector<8x96xf32>
    %c0_18 = arith.constant 0 : index
    %c0_19 = arith.constant 0 : index
    %16 = vector.load %arg4[%c0_18, %c0_19] : memref<32x96xf32, #tpu.memory_space<vmem>>, vector<32x96xf32>
    %cst_20 = arith.constant dense<0.000000e+00> : vector<8x96xf32>
    %17 = tpu.matmul %12, %16, %cst_20 {dimension_numbers = #tpu.dot_dimension_numbers<[1], [0], [0], [1], [0, 0, 1, 1], [], []>} : vector<8x32xf32>, vector<32x96xf32>, vector<8x96xf32> -> vector<8x96xf32>
    %c0_21 = arith.constant 0 : index
    %c0_22 = arith.constant 0 : index
    %18 = vector.load %arg6[%c0_21, %c0_22] : memref<1x96xf32, #tpu.memory_space<vmem>>, vector<1x96xf32>
    %19 = vector.broadcast %18 : vector<1x96xf32> to vector<8x96xf32>
    %20 = arith.addf %17, %19 : vector<8x96xf32>
    %21 = vector.extract_strided_slice %15 {offsets = [0, 0], sizes = [8, 32], strides = [1, 1]} : vector<8x96xf32> to vector<8x32xf32>
    %22 = vector.extract_strided_slice %20 {offsets = [0, 0], sizes = [8, 32], strides = [1, 1]} : vector<8x96xf32> to vector<8x32xf32>
    %23 = arith.addf %21, %22 : vector<8x32xf32>
    %24 = arith.negf %23 : vector<8x32xf32>
    %25 = math.exp %24 : vector<8x32xf32>
    %cst_23 = arith.constant 1.000000e+00 : f32
    %26 = vector.broadcast %cst_23 : f32 to vector<8x32xf32>
    %27 = arith.addf %26, %25 : vector<8x32xf32>
    %28 = arith.divf %26, %27 : vector<8x32xf32>
    %29 = vector.extract_strided_slice %15 {offsets = [0, 32], sizes = [8, 32], strides = [1, 1]} : vector<8x96xf32> to vector<8x32xf32>
    %30 = vector.extract_strided_slice %20 {offsets = [0, 32], sizes = [8, 32], strides = [1, 1]} : vector<8x96xf32> to vector<8x32xf32>
    %31 = arith.addf %29, %30 : vector<8x32xf32>
    %32 = arith.negf %31 : vector<8x32xf32>
    %33 = math.exp %32 : vector<8x32xf32>
    %cst_24 = arith.constant 1.000000e+00 : f32
    %34 = vector.broadcast %cst_24 : f32 to vector<8x32xf32>
    %35 = arith.addf %34, %33 : vector<8x32xf32>
    %36 = arith.divf %34, %35 : vector<8x32xf32>
    %37 = vector.extract_strided_slice %15 {offsets = [0, 64], sizes = [8, 32], strides = [1, 1]} : vector<8x96xf32> to vector<8x32xf32>
    %38 = vector.extract_strided_slice %20 {offsets = [0, 64], sizes = [8, 32], strides = [1, 1]} : vector<8x96xf32> to vector<8x32xf32>
    %39 = arith.mulf %28, %38 : vector<8x32xf32>
    %40 = arith.addf %37, %39 : vector<8x32xf32>
    %41 = math.tanh %40 : vector<8x32xf32>
    %cst_25 = arith.constant 1.000000e+00 : f32
    %42 = vector.broadcast %cst_25 : f32 to vector<8x32xf32>
    %43 = arith.subf %42, %36 : vector<8x32xf32>
    %44 = arith.mulf %43, %41 : vector<8x32xf32>
    %45 = arith.mulf %36, %12 : vector<8x32xf32>
    %46 = arith.addf %44, %45 : vector<8x32xf32>
    %47 = vector.broadcast %c0_i32 : i32 to vector<8x1xi32>
    %48 = arith.cmpi slt, %47, %11 : vector<8x1xi32>
    %cst_26 = arith.constant 1.000000e+00 : f32
    %cst_27 = arith.constant 0.000000e+00 : f32
    %49 = vector.broadcast %cst_26 : f32 to vector<8x1xf32>
    %50 = vector.broadcast %cst_27 : f32 to vector<8x1xf32>
    %51 = arith.select %48, %49, %50 : vector<8x1xi1>, vector<8x1xf32>
    %52 = vector.broadcast %51 : vector<8x1xf32> to vector<8x32xf32>
    %53 = arith.mulf %52, %46 : vector<8x32xf32>
    %cst_28 = arith.constant 1.000000e+00 : f32
    %54 = vector.broadcast %cst_28 : f32 to vector<8x1xf32>
    %55 = arith.subf %54, %51 : vector<8x1xf32>
    %56 = vector.broadcast %55 : vector<8x1xf32> to vector<8x32xf32>
    %57 = arith.mulf %56, %12 : vector<8x32xf32>
    %58 = arith.addf %53, %57 : vector<8x32xf32>
    %c0_29 = arith.constant 0 : index
    %c0_30 = arith.constant 0 : index
    %59 = vector.load %arg13[%c0_29, %c0_30] : memref<8x32xf32, #tpu.memory_space<vmem>>, vector<8x32xf32>
    tpu.vector_store %arg13[%c0_29, %c0_30], %58 {strides = array<i32>} : memref<8x32xf32, #tpu.memory_space<vmem>>, vector<8x32xf32>,
    %60 = vector.broadcast %51 : vector<8x1xf32> to vector<8x32xf32>
    %61 = arith.mulf %60, %46 : vector<8x32xf32>
    %62 = arith.index_cast %c0_i32 : i32 to index
    %c0_31 = arith.constant 0 : index
    %c0_32 = arith.constant 0 : index
    %63 = vector.load %arg15[%62, %c0_31, %c0_32] : memref<8x8x32xf32, #tpu.memory_space<vmem>>, vector<1x8x32xf32>
    %64 = vector.shape_cast %63 : vector<1x8x32xf32> to vector<8x32xf32>
    %65 = vector.shape_cast %61 : vector<8x32xf32> to vector<1x8x32xf32>
    tpu.vector_store %arg15[%62, %c0_31, %c0_32], %65 {strides = array<i32>} : memref<8x8x32xf32, #tpu.memory_space<vmem>>, vector<1x8x32xf32>,
    %c1_i32 = arith.constant 1 : i32
    %c0_33 = arith.constant 0 : index
    %c0_34 = arith.constant 0 : index
    %66 = vector.load %arg13[%c0_33, %c0_34] : memref<8x32xf32, #tpu.memory_space<vmem>>, vector<8x32xf32>
    %67 = arith.index_cast %c1_i32 : i32 to index
    %c0_35 = arith.constant 0 : index
    %c0_36 = arith.constant 0 : index
    %68 = vector.load %arg14[%67, %c0_35, %c0_36] : memref<8x8x96xf32, #tpu.memory_space<vmem>>, vector<1x8x96xf32>
    %69 = vector.shape_cast %68 : vector<1x8x96xf32> to vector<8x96xf32>
    %c0_37 = arith.constant 0 : index
    %c0_38 = arith.constant 0 : index
    %70 = vector.load %arg4[%c0_37, %c0_38] : memref<32x96xf32, #tpu.memory_space<vmem>>, vector<32x96xf32>
    %cst_39 = arith.constant dense<0.000000e+00> : vector<8x96xf32>
    %71 = tpu.matmul %66, %70, %cst_39 {dimension_numbers = #tpu.dot_dimension_numbers<[1], [0], [0], [1], [0, 0, 1, 1], [], []>} : vector<8x32xf32>, vector<32x96xf32>, vector<8x96xf32> -> vector<8x96xf32>
    %c0_40 = arith.constant 0 : index
    %c0_41 = arith.constant 0 : index
    %72 = vector.load %arg6[%c0_40, %c0_41] : memref<1x96xf32, #tpu.memory_space<vmem>>, vector<1x96xf32>
    %73 = vector.broadcast %72 : vector<1x96xf32> to vector<8x96xf32>
    %74 = arith.addf %71, %73 : vector<8x96xf32>
    %75 = vector.extract_strided_slice %69 {offsets = [0, 0], sizes = [8, 32], strides = [1, 1]} : vector<8x96xf32> to vector<8x32xf32>
    %76 = vector.extract_strided_slice %74 {offsets = [0, 0], sizes = [8, 32], strides = [1, 1]} : vector<8x96xf32> to vector<8x32xf32>
    %77 = arith.addf %75, %76 : vector<8x32xf32>
    %78 = arith.negf %77 : vector<8x32xf32>
    %79 = math.exp %78 : vector<8x32xf32>
    %cst_42 = arith.constant 1.000000e+00 : f32
    %80 = vector.broadcast %cst_42 : f32 to vector<8x32xf32>
    %81 = arith.addf %80, %79 : vector<8x32xf32>
    %82 = arith.divf %80, %81 : vector<8x32xf32>
    %83 = vector.extract_strided_slice %69 {offsets = [0, 32], sizes = [8, 32], strides = [1, 1]} : vector<8x96xf32> to vector<8x32xf32>
    %84 = vector.extract_strided_slice %74 {offsets = [0, 32], sizes = [8, 32], strides = [1, 1]} : vector<8x96xf32> to vector<8x32xf32>
    %85 = arith.addf %83, %84 : vector<8x32xf32>
    %86 = arith.negf %85 : vector<8x32xf32>
    %87 = math.exp %86 : vector<8x32xf32>
    %cst_43 = arith.constant 1.000000e+00 : f32
    %88 = vector.broadcast %cst_43 : f32 to vector<8x32xf32>
    %89 = arith.addf %88, %87 : vector<8x32xf32>
    %90 = arith.divf %88, %89 : vector<8x32xf32>
    %91 = vector.extract_strided_slice %69 {offsets = [0, 64], sizes = [8, 32], strides = [1, 1]} : vector<8x96xf32> to vector<8x32xf32>
    %92 = vector.extract_strided_slice %74 {offsets = [0, 64], sizes = [8, 32], strides = [1, 1]} : vector<8x96xf32> to vector<8x32xf32>
    %93 = arith.mulf %82, %92 : vector<8x32xf32>
    %94 = arith.addf %91, %93 : vector<8x32xf32>
    %95 = math.tanh %94 : vector<8x32xf32>
    %cst_44 = arith.constant 1.000000e+00 : f32
    %96 = vector.broadcast %cst_44 : f32 to vector<8x32xf32>
    %97 = arith.subf %96, %90 : vector<8x32xf32>
    %98 = arith.mulf %97, %95 : vector<8x32xf32>
    %99 = arith.mulf %90, %66 : vector<8x32xf32>
    %100 = arith.addf %98, %99 : vector<8x32xf32>
    %101 = vector.broadcast %c1_i32 : i32 to vector<8x1xi32>
    %102 = arith.cmpi slt, %101, %11 : vector<8x1xi32>
    %cst_45 = arith.constant 1.000000e+00 : f32
    %cst_46 = arith.constant 0.000000e+00 : f32
    %103 = vector.broadcast %cst_45 : f32 to vector<8x1xf32>
    %104 = vector.broadcast %cst_46 : f32 to vector<8x1xf32>
    %105 = arith.select %102, %103, %104 : vector<8x1xi1>, vector<8x1xf32>
    %106 = vector.broadcast %105 : vector<8x1xf32> to vector<8x32xf32>
    %107 = arith.mulf %106, %100 : vector<8x32xf32>
    %cst_47 = arith.constant 1.000000e+00 : f32
    %108 = vector.broadcast %cst_47 : f32 to vector<8x1xf32>
    %109 = arith.subf %108, %105 : vector<8x1xf32>
    %110 = vector.broadcast %109 : vector<8x1xf32> to vector<8x32xf32>
    %111 = arith.mulf %110, %66 : vector<8x32xf32>
    %112 = arith.addf %107, %111 : vector<8x32xf32>
    %c0_48 = arith.constant 0 : index
    %c0_49 = arith.constant 0 : index
    %113 = vector.load %arg13[%c0_48, %c0_49] : memref<8x32xf32, #tpu.memory_space<vmem>>, vector<8x32xf32>
    tpu.vector_store %arg13[%c0_48, %c0_49], %112 {strides = array<i32>} : memref<8x32xf32, #tpu.memory_space<vmem>>, vector<8x32xf32>,
    %114 = vector.broadcast %105 : vector<8x1xf32> to vector<8x32xf32>
    %115 = arith.mulf %114, %100 : vector<8x32xf32>
    %116 = arith.index_cast %c1_i32 : i32 to index
    %c0_50 = arith.constant 0 : index
    %c0_51 = arith.constant 0 : index
    %117 = vector.load %arg15[%116, %c0_50, %c0_51] : memref<8x8x32xf32, #tpu.memory_space<vmem>>, vector<1x8x32xf32>
    %118 = vector.shape_cast %117 : vector<1x8x32xf32> to vector<8x32xf32>
    %119 = vector.shape_cast %115 : vector<8x32xf32> to vector<1x8x32xf32>
    tpu.vector_store %arg15[%116, %c0_50, %c0_51], %119 {strides = array<i32>} : memref<8x8x32xf32, #tpu.memory_space<vmem>>, vector<1x8x32xf32>,
    %c2_i32 = arith.constant 2 : i32
    %c0_52 = arith.constant 0 : index
    %c0_53 = arith.constant 0 : index
    %120 = vector.load %arg13[%c0_52, %c0_53] : memref<8x32xf32, #tpu.memory_space<vmem>>, vector<8x32xf32>
    %121 = arith.index_cast %c2_i32 : i32 to index
    %c0_54 = arith.constant 0 : index
    %c0_55 = arith.constant 0 : index
    %122 = vector.load %arg14[%121, %c0_54, %c0_55] : memref<8x8x96xf32, #tpu.memory_space<vmem>>, vector<1x8x96xf32>
    %123 = vector.shape_cast %122 : vector<1x8x96xf32> to vector<8x96xf32>
    %c0_56 = arith.constant 0 : index
    %c0_57 = arith.constant 0 : index
    %124 = vector.load %arg4[%c0_56, %c0_57] : memref<32x96xf32, #tpu.memory_space<vmem>>, vector<32x96xf32>
    %cst_58 = arith.constant dense<0.000000e+00> : vector<8x96xf32>
    %125 = tpu.matmul %120, %124, %cst_58 {dimension_numbers = #tpu.dot_dimension_numbers<[1], [0], [0], [1], [0, 0, 1, 1], [], []>} : vector<8x32xf32>, vector<32x96xf32>, vector<8x96xf32> -> vector<8x96xf32>
    %c0_59 = arith.constant 0 : index
    %c0_60 = arith.constant 0 : index
    %126 = vector.load %arg6[%c0_59, %c0_60] : memref<1x96xf32, #tpu.memory_space<vmem>>, vector<1x96xf32>
    %127 = vector.broadcast %126 : vector<1x96xf32> to vector<8x96xf32>
    %128 = arith.addf %125, %127 : vector<8x96xf32>
    %129 = vector.extract_strided_slice %123 {offsets = [0, 0], sizes = [8, 32], strides = [1, 1]} : vector<8x96xf32> to vector<8x32xf32>
    %130 = vector.extract_strided_slice %128 {offsets = [0, 0], sizes = [8, 32], strides = [1, 1]} : vector<8x96xf32> to vector<8x32xf32>
    %131 = arith.addf %129, %130 : vector<8x32xf32>
    %132 = arith.negf %131 : vector<8x32xf32>
    %133 = math.exp %132 : vector<8x32xf32>
    %cst_61 = arith.constant 1.000000e+00 : f32
    %134 = vector.broadcast %cst_61 : f32 to vector<8x32xf32>
    %135 = arith.addf %134, %133 : vector<8x32xf32>
    %136 = arith.divf %134, %135 : vector<8x32xf32>
    %137 = vector.extract_strided_slice %123 {offsets = [0, 32], sizes = [8, 32], strides = [1, 1]} : vector<8x96xf32> to vector<8x32xf32>
    %138 = vector.extract_strided_slice %128 {offsets = [0, 32], sizes = [8, 32], strides = [1, 1]} : vector<8x96xf32> to vector<8x32xf32>
    %139 = arith.addf %137, %138 : vector<8x32xf32>
    %140 = arith.negf %139 : vector<8x32xf32>
    %141 = math.exp %140 : vector<8x32xf32>
    %cst_62 = arith.constant 1.000000e+00 : f32
    %142 = vector.broadcast %cst_62 : f32 to vector<8x32xf32>
    %143 = arith.addf %142, %141 : vector<8x32xf32>
    %144 = arith.divf %142, %143 : vector<8x32xf32>
    %145 = vector.extract_strided_slice %123 {offsets = [0, 64], sizes = [8, 32], strides = [1, 1]} : vector<8x96xf32> to vector<8x32xf32>
    %146 = vector.extract_strided_slice %128 {offsets = [0, 64], sizes = [8, 32], strides = [1, 1]} : vector<8x96xf32> to vector<8x32xf32>
    %147 = arith.mulf %136, %146 : vector<8x32xf32>
    %148 = arith.addf %145, %147 : vector<8x32xf32>
    %149 = math.tanh %148 : vector<8x32xf32>
    %cst_63 = arith.constant 1.000000e+00 : f32
    %150 = vector.broadcast %cst_63 : f32 to vector<8x32xf32>
    %151 = arith.subf %150, %144 : vector<8x32xf32>
    %152 = arith.mulf %151, %149 : vector<8x32xf32>
    %153 = arith.mulf %144, %120 : vector<8x32xf32>
    %154 = arith.addf %152, %153 : vector<8x32xf32>
    %155 = vector.broadcast %c2_i32 : i32 to vector<8x1xi32>
    %156 = arith.cmpi slt, %155, %11 : vector<8x1xi32>
    %cst_64 = arith.constant 1.000000e+00 : f32
    %cst_65 = arith.constant 0.000000e+00 : f32
    %157 = vector.broadcast %cst_64 : f32 to vector<8x1xf32>
    %158 = vector.broadcast %cst_65 : f32 to vector<8x1xf32>
    %159 = arith.select %156, %157, %158 : vector<8x1xi1>, vector<8x1xf32>
    %160 = vector.broadcast %159 : vector<8x1xf32> to vector<8x32xf32>
    %161 = arith.mulf %160, %154 : vector<8x32xf32>
    %cst_66 = arith.constant 1.000000e+00 : f32
    %162 = vector.broadcast %cst_66 : f32 to vector<8x1xf32>
    %163 = arith.subf %162, %159 : vector<8x1xf32>
    %164 = vector.broadcast %163 : vector<8x1xf32> to vector<8x32xf32>
    %165 = arith.mulf %164, %120 : vector<8x32xf32>
    %166 = arith.addf %161, %165 : vector<8x32xf32>
    %c0_67 = arith.constant 0 : index
    %c0_68 = arith.constant 0 : index
    %167 = vector.load %arg13[%c0_67, %c0_68] : memref<8x32xf32, #tpu.memory_space<vmem>>, vector<8x32xf32>
    tpu.vector_store %arg13[%c0_67, %c0_68], %166 {strides = array<i32>} : memref<8x32xf32, #tpu.memory_space<vmem>>, vector<8x32xf32>,
    %168 = vector.broadcast %159 : vector<8x1xf32> to vector<8x32xf32>
    %169 = arith.mulf %168, %154 : vector<8x32xf32>
    %170 = arith.index_cast %c2_i32 : i32 to index
    %c0_69 = arith.constant 0 : index
    %c0_70 = arith.constant 0 : index
    %171 = vector.load %arg15[%170, %c0_69, %c0_70] : memref<8x8x32xf32, #tpu.memory_space<vmem>>, vector<1x8x32xf32>
    %172 = vector.shape_cast %171 : vector<1x8x32xf32> to vector<8x32xf32>
    %173 = vector.shape_cast %169 : vector<8x32xf32> to vector<1x8x32xf32>
    tpu.vector_store %arg15[%170, %c0_69, %c0_70], %173 {strides = array<i32>} : memref<8x8x32xf32, #tpu.memory_space<vmem>>, vector<1x8x32xf32>,
    %c3_i32 = arith.constant 3 : i32
    %c0_71 = arith.constant 0 : index
    %c0_72 = arith.constant 0 : index
    %174 = vector.load %arg13[%c0_71, %c0_72] : memref<8x32xf32, #tpu.memory_space<vmem>>, vector<8x32xf32>
    %175 = arith.index_cast %c3_i32 : i32 to index
    %c0_73 = arith.constant 0 : index
    %c0_74 = arith.constant 0 : index
    %176 = vector.load %arg14[%175, %c0_73, %c0_74] : memref<8x8x96xf32, #tpu.memory_space<vmem>>, vector<1x8x96xf32>
    %177 = vector.shape_cast %176 : vector<1x8x96xf32> to vector<8x96xf32>
    %c0_75 = arith.constant 0 : index
    %c0_76 = arith.constant 0 : index
    %178 = vector.load %arg4[%c0_75, %c0_76] : memref<32x96xf32, #tpu.memory_space<vmem>>, vector<32x96xf32>
    %cst_77 = arith.constant dense<0.000000e+00> : vector<8x96xf32>
    %179 = tpu.matmul %174, %178, %cst_77 {dimension_numbers = #tpu.dot_dimension_numbers<[1], [0], [0], [1], [0, 0, 1, 1], [], []>} : vector<8x32xf32>, vector<32x96xf32>, vector<8x96xf32> -> vector<8x96xf32>
    %c0_78 = arith.constant 0 : index
    %c0_79 = arith.constant 0 : index
    %180 = vector.load %arg6[%c0_78, %c0_79] : memref<1x96xf32, #tpu.memory_space<vmem>>, vector<1x96xf32>
    %181 = vector.broadcast %180 : vector<1x96xf32> to vector<8x96xf32>
    %182 = arith.addf %179, %181 : vector<8x96xf32>
    %183 = vector.extract_strided_slice %177 {offsets = [0, 0], sizes = [8, 32], strides = [1, 1]} : vector<8x96xf32> to vector<8x32xf32>
    %184 = vector.extract_strided_slice %182 {offsets = [0, 0], sizes = [8, 32], strides = [1, 1]} : vector<8x96xf32> to vector<8x32xf32>
    %185 = arith.addf %183, %184 : vector<8x32xf32>
    %186 = arith.negf %185 : vector<8x32xf32>
    %187 = math.exp %186 : vector<8x32xf32>
    %cst_80 = arith.constant 1.000000e+00 : f32
    %188 = vector.broadcast %cst_80 : f32 to vector<8x32xf32>
    %189 = arith.addf %188, %187 : vector<8x32xf32>
    %190 = arith.divf %188, %189 : vector<8x32xf32>
    %191 = vector.extract_strided_slice %177 {offsets = [0, 32], sizes = [8, 32], strides = [1, 1]} : vector<8x96xf32> to vector<8x32xf32>
    %192 = vector.extract_strided_slice %182 {offsets = [0, 32], sizes = [8, 32], strides = [1, 1]} : vector<8x96xf32> to vector<8x32xf32>
    %193 = arith.addf %191, %192 : vector<8x32xf32>
    %194 = arith.negf %193 : vector<8x32xf32>
    %195 = math.exp %194 : vector<8x32xf32>
    %cst_81 = arith.constant 1.000000e+00 : f32
    %196 = vector.broadcast %cst_81 : f32 to vector<8x32xf32>
    %197 = arith.addf %196, %195 : vector<8x32xf32>
    %198 = arith.divf %196, %197 : vector<8x32xf32>
    %199 = vector.extract_strided_slice %177 {offsets = [0, 64], sizes = [8, 32], strides = [1, 1]} : vector<8x96xf32> to vector<8x32xf32>
    %200 = vector.extract_strided_slice %182 {offsets = [0, 64], sizes = [8, 32], strides = [1, 1]} : vector<8x96xf32> to vector<8x32xf32>
    %201 = arith.mulf %190, %200 : vector<8x32xf32>
    %202 = arith.addf %199, %201 : vector<8x32xf32>
    %203 = math.tanh %202 : vector<8x32xf32>
    %cst_82 = arith.constant 1.000000e+00 : f32
    %204 = vector.broadcast %cst_82 : f32 to vector<8x32xf32>
    %205 = arith.subf %204, %198 : vector<8x32xf32>
    %206 = arith.mulf %205, %203 : vector<8x32xf32>
    %207 = arith.mulf %198, %174 : vector<8x32xf32>
    %208 = arith.addf %206, %207 : vector<8x32xf32>
    %209 = vector.broadcast %c3_i32 : i32 to vector<8x1xi32>
    %210 = arith.cmpi slt, %209, %11 : vector<8x1xi32>
    %cst_83 = arith.constant 1.000000e+00 : f32
    %cst_84 = arith.constant 0.000000e+00 : f32
    %211 = vector.broadcast %cst_83 : f32 to vector<8x1xf32>
    %212 = vector.broadcast %cst_84 : f32 to vector<8x1xf32>
    %213 = arith.select %210, %211, %212 : vector<8x1xi1>, vector<8x1xf32>
    %214 = vector.broadcast %213 : vector<8x1xf32> to vector<8x32xf32>
    %215 = arith.mulf %214, %208 : vector<8x32xf32>
    %cst_85 = arith.constant 1.000000e+00 : f32
    %216 = vector.broadcast %cst_85 : f32 to vector<8x1xf32>
    %217 = arith.subf %216, %213 : vector<8x1xf32>
    %218 = vector.broadcast %217 : vector<8x1xf32> to vector<8x32xf32>
    %219 = arith.mulf %218, %174 : vector<8x32xf32>
    %220 = arith.addf %215, %219 : vector<8x32xf32>
    %c0_86 = arith.constant 0 : index
    %c0_87 = arith.constant 0 : index
    %221 = vector.load %arg13[%c0_86, %c0_87] : memref<8x32xf32, #tpu.memory_space<vmem>>, vector<8x32xf32>
    tpu.vector_store %arg13[%c0_86, %c0_87], %220 {strides = array<i32>} : memref<8x32xf32, #tpu.memory_space<vmem>>, vector<8x32xf32>,
    %222 = vector.broadcast %213 : vector<8x1xf32> to vector<8x32xf32>
    %223 = arith.mulf %222, %208 : vector<8x32xf32>
    %224 = arith.index_cast %c3_i32 : i32 to index
    %c0_88 = arith.constant 0 : index
    %c0_89 = arith.constant 0 : index
    %225 = vector.load %arg15[%224, %c0_88, %c0_89] : memref<8x8x32xf32, #tpu.memory_space<vmem>>, vector<1x8x32xf32>
    %226 = vector.shape_cast %225 : vector<1x8x32xf32> to vector<8x32xf32>
    %227 = vector.shape_cast %223 : vector<8x32xf32> to vector<1x8x32xf32>
    tpu.vector_store %arg15[%224, %c0_88, %c0_89], %227 {strides = array<i32>} : memref<8x8x32xf32, #tpu.memory_space<vmem>>, vector<1x8x32xf32>,
    %c4_i32 = arith.constant 4 : i32
    %c0_90 = arith.constant 0 : index
    %c0_91 = arith.constant 0 : index
    %228 = vector.load %arg13[%c0_90, %c0_91] : memref<8x32xf32, #tpu.memory_space<vmem>>, vector<8x32xf32>
    %229 = arith.index_cast %c4_i32 : i32 to index
    %c0_92 = arith.constant 0 : index
    %c0_93 = arith.constant 0 : index
    %230 = vector.load %arg14[%229, %c0_92, %c0_93] : memref<8x8x96xf32, #tpu.memory_space<vmem>>, vector<1x8x96xf32>
    %231 = vector.shape_cast %230 : vector<1x8x96xf32> to vector<8x96xf32>
    %c0_94 = arith.constant 0 : index
    %c0_95 = arith.constant 0 : index
    %232 = vector.load %arg4[%c0_94, %c0_95] : memref<32x96xf32, #tpu.memory_space<vmem>>, vector<32x96xf32>
    %cst_96 = arith.constant dense<0.000000e+00> : vector<8x96xf32>
    %233 = tpu.matmul %228, %232, %cst_96 {dimension_numbers = #tpu.dot_dimension_numbers<[1], [0], [0], [1], [0, 0, 1, 1], [], []>} : vector<8x32xf32>, vector<32x96xf32>, vector<8x96xf32> -> vector<8x96xf32>
    %c0_97 = arith.constant 0 : index
    %c0_98 = arith.constant 0 : index
    %234 = vector.load %arg6[%c0_97, %c0_98] : memref<1x96xf32, #tpu.memory_space<vmem>>, vector<1x96xf32>
    %235 = vector.broadcast %234 : vector<1x96xf32> to vector<8x96xf32>
    %236 = arith.addf %233, %235 : vector<8x96xf32>
    %237 = vector.extract_strided_slice %231 {offsets = [0, 0], sizes = [8, 32], strides = [1, 1]} : vector<8x96xf32> to vector<8x32xf32>
    %238 = vector.extract_strided_slice %236 {offsets = [0, 0], sizes = [8, 32], strides = [1, 1]} : vector<8x96xf32> to vector<8x32xf32>
    %239 = arith.addf %237, %238 : vector<8x32xf32>
    %240 = arith.negf %239 : vector<8x32xf32>
    %241 = math.exp %240 : vector<8x32xf32>
    %cst_99 = arith.constant 1.000000e+00 : f32
    %242 = vector.broadcast %cst_99 : f32 to vector<8x32xf32>
    %243 = arith.addf %242, %241 : vector<8x32xf32>
    %244 = arith.divf %242, %243 : vector<8x32xf32>
    %245 = vector.extract_strided_slice %231 {offsets = [0, 32], sizes = [8, 32], strides = [1, 1]} : vector<8x96xf32> to vector<8x32xf32>
    %246 = vector.extract_strided_slice %236 {offsets = [0, 32], sizes = [8, 32], strides = [1, 1]} : vector<8x96xf32> to vector<8x32xf32>
    %247 = arith.addf %245, %246 : vector<8x32xf32>
    %248 = arith.negf %247 : vector<8x32xf32>
    %249 = math.exp %248 : vector<8x32xf32>
    %cst_100 = arith.constant 1.000000e+00 : f32
    %250 = vector.broadcast %cst_100 : f32 to vector<8x32xf32>
    %251 = arith.addf %250, %249 : vector<8x32xf32>
    %252 = arith.divf %250, %251 : vector<8x32xf32>
    %253 = vector.extract_strided_slice %231 {offsets = [0, 64], sizes = [8, 32], strides = [1, 1]} : vector<8x96xf32> to vector<8x32xf32>
    %254 = vector.extract_strided_slice %236 {offsets = [0, 64], sizes = [8, 32], strides = [1, 1]} : vector<8x96xf32> to vector<8x32xf32>
    %255 = arith.mulf %244, %254 : vector<8x32xf32>
    %256 = arith.addf %253, %255 : vector<8x32xf32>
    %257 = math.tanh %256 : vector<8x32xf32>
    %cst_101 = arith.constant 1.000000e+00 : f32
    %258 = vector.broadcast %cst_101 : f32 to vector<8x32xf32>
    %259 = arith.subf %258, %252 : vector<8x32xf32>
    %260 = arith.mulf %259, %257 : vector<8x32xf32>
    %261 = arith.mulf %252, %228 : vector<8x32xf32>
    %262 = arith.addf %260, %261 : vector<8x32xf32>
    %263 = vector.broadcast %c4_i32 : i32 to vector<8x1xi32>
    %264 = arith.cmpi slt, %263, %11 : vector<8x1xi32>
    %cst_102 = arith.constant 1.000000e+00 : f32
    %cst_103 = arith.constant 0.000000e+00 : f32
    %265 = vector.broadcast %cst_102 : f32 to vector<8x1xf32>
    %266 = vector.broadcast %cst_103 : f32 to vector<8x1xf32>
    %267 = arith.select %264, %265, %266 : vector<8x1xi1>, vector<8x1xf32>
    %268 = vector.broadcast %267 : vector<8x1xf32> to vector<8x32xf32>
    %269 = arith.mulf %268, %262 : vector<8x32xf32>
    %cst_104 = arith.constant 1.000000e+00 : f32
    %270 = vector.broadcast %cst_104 : f32 to vector<8x1xf32>
    %271 = arith.subf %270, %267 : vector<8x1xf32>
    %272 = vector.broadcast %271 : vector<8x1xf32> to vector<8x32xf32>
    %273 = arith.mulf %272, %228 : vector<8x32xf32>
    %274 = arith.addf %269, %273 : vector<8x32xf32>
    %c0_105 = arith.constant 0 : index
    %c0_106 = arith.constant 0 : index
    %275 = vector.load %arg13[%c0_105, %c0_106] : memref<8x32xf32, #tpu.memory_space<vmem>>, vector<8x32xf32>
    tpu.vector_store %arg13[%c0_105, %c0_106], %274 {strides = array<i32>} : memref<8x32xf32, #tpu.memory_space<vmem>>, vector<8x32xf32>,
    %276 = vector.broadcast %267 : vector<8x1xf32> to vector<8x32xf32>
    %277 = arith.mulf %276, %262 : vector<8x32xf32>
    %278 = arith.index_cast %c4_i32 : i32 to index
    %c0_107 = arith.constant 0 : index
    %c0_108 = arith.constant 0 : index
    %279 = vector.load %arg15[%278, %c0_107, %c0_108] : memref<8x8x32xf32, #tpu.memory_space<vmem>>, vector<1x8x32xf32>
    %280 = vector.shape_cast %279 : vector<1x8x32xf32> to vector<8x32xf32>
    %281 = vector.shape_cast %277 : vector<8x32xf32> to vector<1x8x32xf32>
    tpu.vector_store %arg15[%278, %c0_107, %c0_108], %281 {strides = array<i32>} : memref<8x8x32xf32, #tpu.memory_space<vmem>>, vector<1x8x32xf32>,
    %c5_i32 = arith.constant 5 : i32
    %c0_109 = arith.constant 0 : index
    %c0_110 = arith.constant 0 : index
    %282 = vector.load %arg13[%c0_109, %c0_110] : memref<8x32xf32, #tpu.memory_space<vmem>>, vector<8x32xf32>
    %283 = arith.index_cast %c5_i32 : i32 to index
    %c0_111 = arith.constant 0 : index
    %c0_112 = arith.constant 0 : index
    %284 = vector.load %arg14[%283, %c0_111, %c0_112] : memref<8x8x96xf32, #tpu.memory_space<vmem>>, vector<1x8x96xf32>
    %285 = vector.shape_cast %284 : vector<1x8x96xf32> to vector<8x96xf32>
    %c0_113 = arith.constant 0 : index
    %c0_114 = arith.constant 0 : index
    %286 = vector.load %arg4[%c0_113, %c0_114] : memref<32x96xf32, #tpu.memory_space<vmem>>, vector<32x96xf32>
    %cst_115 = arith.constant dense<0.000000e+00> : vector<8x96xf32>
    %287 = tpu.matmul %282, %286, %cst_115 {dimension_numbers = #tpu.dot_dimension_numbers<[1], [0], [0], [1], [0, 0, 1, 1], [], []>} : vector<8x32xf32>, vector<32x96xf32>, vector<8x96xf32> -> vector<8x96xf32>
    %c0_116 = arith.constant 0 : index
    %c0_117 = arith.constant 0 : index
    %288 = vector.load %arg6[%c0_116, %c0_117] : memref<1x96xf32, #tpu.memory_space<vmem>>, vector<1x96xf32>
    %289 = vector.broadcast %288 : vector<1x96xf32> to vector<8x96xf32>
    %290 = arith.addf %287, %289 : vector<8x96xf32>
    %291 = vector.extract_strided_slice %285 {offsets = [0, 0], sizes = [8, 32], strides = [1, 1]} : vector<8x96xf32> to vector<8x32xf32>
    %292 = vector.extract_strided_slice %290 {offsets = [0, 0], sizes = [8, 32], strides = [1, 1]} : vector<8x96xf32> to vector<8x32xf32>
    %293 = arith.addf %291, %292 : vector<8x32xf32>
    %294 = arith.negf %293 : vector<8x32xf32>
    %295 = math.exp %294 : vector<8x32xf32>
    %cst_118 = arith.constant 1.000000e+00 : f32
    %296 = vector.broadcast %cst_118 : f32 to vector<8x32xf32>
    %297 = arith.addf %296, %295 : vector<8x32xf32>
    %298 = arith.divf %296, %297 : vector<8x32xf32>
    %299 = vector.extract_strided_slice %285 {offsets = [0, 32], sizes = [8, 32], strides = [1, 1]} : vector<8x96xf32> to vector<8x32xf32>
    %300 = vector.extract_strided_slice %290 {offsets = [0, 32], sizes = [8, 32], strides = [1, 1]} : vector<8x96xf32> to vector<8x32xf32>
    %301 = arith.addf %299, %300 : vector<8x32xf32>
    %302 = arith.negf %301 : vector<8x32xf32>
    %303 = math.exp %302 : vector<8x32xf32>
    %cst_119 = arith.constant 1.000000e+00 : f32
    %304 = vector.broadcast %cst_119 : f32 to vector<8x32xf32>
    %305 = arith.addf %304, %303 : vector<8x32xf32>
    %306 = arith.divf %304, %305 : vector<8x32xf32>
    %307 = vector.extract_strided_slice %285 {offsets = [0, 64], sizes = [8, 32], strides = [1, 1]} : vector<8x96xf32> to vector<8x32xf32>
    %308 = vector.extract_strided_slice %290 {offsets = [0, 64], sizes = [8, 32], strides = [1, 1]} : vector<8x96xf32> to vector<8x32xf32>
    %309 = arith.mulf %298, %308 : vector<8x32xf32>
    %310 = arith.addf %307, %309 : vector<8x32xf32>
    %311 = math.tanh %310 : vector<8x32xf32>
    %cst_120 = arith.constant 1.000000e+00 : f32
    %312 = vector.broadcast %cst_120 : f32 to vector<8x32xf32>
    %313 = arith.subf %312, %306 : vector<8x32xf32>
    %314 = arith.mulf %313, %311 : vector<8x32xf32>
    %315 = arith.mulf %306, %282 : vector<8x32xf32>
    %316 = arith.addf %314, %315 : vector<8x32xf32>
    %317 = vector.broadcast %c5_i32 : i32 to vector<8x1xi32>
    %318 = arith.cmpi slt, %317, %11 : vector<8x1xi32>
    %cst_121 = arith.constant 1.000000e+00 : f32
    %cst_122 = arith.constant 0.000000e+00 : f32
    %319 = vector.broadcast %cst_121 : f32 to vector<8x1xf32>
    %320 = vector.broadcast %cst_122 : f32 to vector<8x1xf32>
    %321 = arith.select %318, %319, %320 : vector<8x1xi1>, vector<8x1xf32>
    %322 = vector.broadcast %321 : vector<8x1xf32> to vector<8x32xf32>
    %323 = arith.mulf %322, %316 : vector<8x32xf32>
    %cst_123 = arith.constant 1.000000e+00 : f32
    %324 = vector.broadcast %cst_123 : f32 to vector<8x1xf32>
    %325 = arith.subf %324, %321 : vector<8x1xf32>
    %326 = vector.broadcast %325 : vector<8x1xf32> to vector<8x32xf32>
    %327 = arith.mulf %326, %282 : vector<8x32xf32>
    %328 = arith.addf %323, %327 : vector<8x32xf32>
    %c0_124 = arith.constant 0 : index
    %c0_125 = arith.constant 0 : index
    %329 = vector.load %arg13[%c0_124, %c0_125] : memref<8x32xf32, #tpu.memory_space<vmem>>, vector<8x32xf32>
    tpu.vector_store %arg13[%c0_124, %c0_125], %328 {strides = array<i32>} : memref<8x32xf32, #tpu.memory_space<vmem>>, vector<8x32xf32>,
    %330 = vector.broadcast %321 : vector<8x1xf32> to vector<8x32xf32>
    %331 = arith.mulf %330, %316 : vector<8x32xf32>
    %332 = arith.index_cast %c5_i32 : i32 to index
    %c0_126 = arith.constant 0 : index
    %c0_127 = arith.constant 0 : index
    %333 = vector.load %arg15[%332, %c0_126, %c0_127] : memref<8x8x32xf32, #tpu.memory_space<vmem>>, vector<1x8x32xf32>
    %334 = vector.shape_cast %333 : vector<1x8x32xf32> to vector<8x32xf32>
    %335 = vector.shape_cast %331 : vector<8x32xf32> to vector<1x8x32xf32>
    tpu.vector_store %arg15[%332, %c0_126, %c0_127], %335 {strides = array<i32>} : memref<8x8x32xf32, #tpu.memory_space<vmem>>, vector<1x8x32xf32>,
    %c6_i32 = arith.constant 6 : i32
    %c0_128 = arith.constant 0 : index
    %c0_129 = arith.constant 0 : index
    %336 = vector.load %arg13[%c0_128, %c0_129] : memref<8x32xf32, #tpu.memory_space<vmem>>, vector<8x32xf32>
    %337 = arith.index_cast %c6_i32 : i32 to index
    %c0_130 = arith.constant 0 : index
    %c0_131 = arith.constant 0 : index
    %338 = vector.load %arg14[%337, %c0_130, %c0_131] : memref<8x8x96xf32, #tpu.memory_space<vmem>>, vector<1x8x96xf32>
    %339 = vector.shape_cast %338 : vector<1x8x96xf32> to vector<8x96xf32>
    %c0_132 = arith.constant 0 : index
    %c0_133 = arith.constant 0 : index
    %340 = vector.load %arg4[%c0_132, %c0_133] : memref<32x96xf32, #tpu.memory_space<vmem>>, vector<32x96xf32>
    %cst_134 = arith.constant dense<0.000000e+00> : vector<8x96xf32>
    %341 = tpu.matmul %336, %340, %cst_134 {dimension_numbers = #tpu.dot_dimension_numbers<[1], [0], [0], [1], [0, 0, 1, 1], [], []>} : vector<8x32xf32>, vector<32x96xf32>, vector<8x96xf32> -> vector<8x96xf32>
    %c0_135 = arith.constant 0 : index
    %c0_136 = arith.constant 0 : index
    %342 = vector.load %arg6[%c0_135, %c0_136] : memref<1x96xf32, #tpu.memory_space<vmem>>, vector<1x96xf32>
    %343 = vector.broadcast %342 : vector<1x96xf32> to vector<8x96xf32>
    %344 = arith.addf %341, %343 : vector<8x96xf32>
    %345 = vector.extract_strided_slice %339 {offsets = [0, 0], sizes = [8, 32], strides = [1, 1]} : vector<8x96xf32> to vector<8x32xf32>
    %346 = vector.extract_strided_slice %344 {offsets = [0, 0], sizes = [8, 32], strides = [1, 1]} : vector<8x96xf32> to vector<8x32xf32>
    %347 = arith.addf %345, %346 : vector<8x32xf32>
    %348 = arith.negf %347 : vector<8x32xf32>
    %349 = math.exp %348 : vector<8x32xf32>
    %cst_137 = arith.constant 1.000000e+00 : f32
    %350 = vector.broadcast %cst_137 : f32 to vector<8x32xf32>
    %351 = arith.addf %350, %349 : vector<8x32xf32>
    %352 = arith.divf %350, %351 : vector<8x32xf32>
    %353 = vector.extract_strided_slice %339 {offsets = [0, 32], sizes = [8, 32], strides = [1, 1]} : vector<8x96xf32> to vector<8x32xf32>
    %354 = vector.extract_strided_slice %344 {offsets = [0, 32], sizes = [8, 32], strides = [1, 1]} : vector<8x96xf32> to vector<8x32xf32>
    %355 = arith.addf %353, %354 : vector<8x32xf32>
    %356 = arith.negf %355 : vector<8x32xf32>
    %357 = math.exp %356 : vector<8x32xf32>
    %cst_138 = arith.constant 1.000000e+00 : f32
    %358 = vector.broadcast %cst_138 : f32 to vector<8x32xf32>
    %359 = arith.addf %358, %357 : vector<8x32xf32>
    %360 = arith.divf %358, %359 : vector<8x32xf32>
    %361 = vector.extract_strided_slice %339 {offsets = [0, 64], sizes = [8, 32], strides = [1, 1]} : vector<8x96xf32> to vector<8x32xf32>
    %362 = vector.extract_strided_slice %344 {offsets = [0, 64], sizes = [8, 32], strides = [1, 1]} : vector<8x96xf32> to vector<8x32xf32>
    %363 = arith.mulf %352, %362 : vector<8x32xf32>
    %364 = arith.addf %361, %363 : vector<8x32xf32>
    %365 = math.tanh %364 : vector<8x32xf32>
    %cst_139 = arith.constant 1.000000e+00 : f32
    %366 = vector.broadcast %cst_139 : f32 to vector<8x32xf32>
    %367 = arith.subf %366, %360 : vector<8x32xf32>
    %368 = arith.mulf %367, %365 : vector<8x32xf32>
    %369 = arith.mulf %360, %336 : vector<8x32xf32>
    %370 = arith.addf %368, %369 : vector<8x32xf32>
    %371 = vector.broadcast %c6_i32 : i32 to vector<8x1xi32>
    %372 = arith.cmpi slt, %371, %11 : vector<8x1xi32>
    %cst_140 = arith.constant 1.000000e+00 : f32
    %cst_141 = arith.constant 0.000000e+00 : f32
    %373 = vector.broadcast %cst_140 : f32 to vector<8x1xf32>
    %374 = vector.broadcast %cst_141 : f32 to vector<8x1xf32>
    %375 = arith.select %372, %373, %374 : vector<8x1xi1>, vector<8x1xf32>
    %376 = vector.broadcast %375 : vector<8x1xf32> to vector<8x32xf32>
    %377 = arith.mulf %376, %370 : vector<8x32xf32>
    %cst_142 = arith.constant 1.000000e+00 : f32
    %378 = vector.broadcast %cst_142 : f32 to vector<8x1xf32>
    %379 = arith.subf %378, %375 : vector<8x1xf32>
    %380 = vector.broadcast %379 : vector<8x1xf32> to vector<8x32xf32>
    %381 = arith.mulf %380, %336 : vector<8x32xf32>
    %382 = arith.addf %377, %381 : vector<8x32xf32>
    %c0_143 = arith.constant 0 : index
    %c0_144 = arith.constant 0 : index
    %383 = vector.load %arg13[%c0_143, %c0_144] : memref<8x32xf32, #tpu.memory_space<vmem>>, vector<8x32xf32>
    tpu.vector_store %arg13[%c0_143, %c0_144], %382 {strides = array<i32>} : memref<8x32xf32, #tpu.memory_space<vmem>>, vector<8x32xf32>,
    %384 = vector.broadcast %375 : vector<8x1xf32> to vector<8x32xf32>
    %385 = arith.mulf %384, %370 : vector<8x32xf32>
    %386 = arith.index_cast %c6_i32 : i32 to index
    %c0_145 = arith.constant 0 : index
    %c0_146 = arith.constant 0 : index
    %387 = vector.load %arg15[%386, %c0_145, %c0_146] : memref<8x8x32xf32, #tpu.memory_space<vmem>>, vector<1x8x32xf32>
    %388 = vector.shape_cast %387 : vector<1x8x32xf32> to vector<8x32xf32>
    %389 = vector.shape_cast %385 : vector<8x32xf32> to vector<1x8x32xf32>
    tpu.vector_store %arg15[%386, %c0_145, %c0_146], %389 {strides = array<i32>} : memref<8x8x32xf32, #tpu.memory_space<vmem>>, vector<1x8x32xf32>,
    %c7_i32 = arith.constant 7 : i32
    %c0_147 = arith.constant 0 : index
    %c0_148 = arith.constant 0 : index
    %390 = vector.load %arg13[%c0_147, %c0_148] : memref<8x32xf32, #tpu.memory_space<vmem>>, vector<8x32xf32>
    %391 = arith.index_cast %c7_i32 : i32 to index
    %c0_149 = arith.constant 0 : index
    %c0_150 = arith.constant 0 : index
    %392 = vector.load %arg14[%391, %c0_149, %c0_150] : memref<8x8x96xf32, #tpu.memory_space<vmem>>, vector<1x8x96xf32>
    %393 = vector.shape_cast %392 : vector<1x8x96xf32> to vector<8x96xf32>
    %c0_151 = arith.constant 0 : index
    %c0_152 = arith.constant 0 : index
    %394 = vector.load %arg4[%c0_151, %c0_152] : memref<32x96xf32, #tpu.memory_space<vmem>>, vector<32x96xf32>
    %cst_153 = arith.constant dense<0.000000e+00> : vector<8x96xf32>
    %395 = tpu.matmul %390, %394, %cst_153 {dimension_numbers = #tpu.dot_dimension_numbers<[1], [0], [0], [1], [0, 0, 1, 1], [], []>} : vector<8x32xf32>, vector<32x96xf32>, vector<8x96xf32> -> vector<8x96xf32>
    %c0_154 = arith.constant 0 : index
    %c0_155 = arith.constant 0 : index
    %396 = vector.load %arg6[%c0_154, %c0_155] : memref<1x96xf32, #tpu.memory_space<vmem>>, vector<1x96xf32>
    %397 = vector.broadcast %396 : vector<1x96xf32> to vector<8x96xf32>
    %398 = arith.addf %395, %397 : vector<8x96xf32>
    %399 = vector.extract_strided_slice %393 {offsets = [0, 0], sizes = [8, 32], strides = [1, 1]} : vector<8x96xf32> to vector<8x32xf32>
    %400 = vector.extract_strided_slice %398 {offsets = [0, 0], sizes = [8, 32], strides = [1, 1]} : vector<8x96xf32> to vector<8x32xf32>
    %401 = arith.addf %399, %400 : vector<8x32xf32>
    %402 = arith.negf %401 : vector<8x32xf32>
    %403 = math.exp %402 : vector<8x32xf32>
    %cst_156 = arith.constant 1.000000e+00 : f32
    %404 = vector.broadcast %cst_156 : f32 to vector<8x32xf32>
    %405 = arith.addf %404, %403 : vector<8x32xf32>
    %406 = arith.divf %404, %405 : vector<8x32xf32>
    %407 = vector.extract_strided_slice %393 {offsets = [0, 32], sizes = [8, 32], strides = [1, 1]} : vector<8x96xf32> to vector<8x32xf32>
    %408 = vector.extract_strided_slice %398 {offsets = [0, 32], sizes = [8, 32], strides = [1, 1]} : vector<8x96xf32> to vector<8x32xf32>
    %409 = arith.addf %407, %408 : vector<8x32xf32>
    %410 = arith.negf %409 : vector<8x32xf32>
    %411 = math.exp %410 : vector<8x32xf32>
    %cst_157 = arith.constant 1.000000e+00 : f32
    %412 = vector.broadcast %cst_157 : f32 to vector<8x32xf32>
    %413 = arith.addf %412, %411 : vector<8x32xf32>
    %414 = arith.divf %412, %413 : vector<8x32xf32>
    %415 = vector.extract_strided_slice %393 {offsets = [0, 64], sizes = [8, 32], strides = [1, 1]} : vector<8x96xf32> to vector<8x32xf32>
    %416 = vector.extract_strided_slice %398 {offsets = [0, 64], sizes = [8, 32], strides = [1, 1]} : vector<8x96xf32> to vector<8x32xf32>
    %417 = arith.mulf %406, %416 : vector<8x32xf32>
    %418 = arith.addf %415, %417 : vector<8x32xf32>
    %419 = math.tanh %418 : vector<8x32xf32>
    %cst_158 = arith.constant 1.000000e+00 : f32
    %420 = vector.broadcast %cst_158 : f32 to vector<8x32xf32>
    %421 = arith.subf %420, %414 : vector<8x32xf32>
    %422 = arith.mulf %421, %419 : vector<8x32xf32>
    %423 = arith.mulf %414, %390 : vector<8x32xf32>
    %424 = arith.addf %422, %423 : vector<8x32xf32>
    %425 = vector.broadcast %c7_i32 : i32 to vector<8x1xi32>
    %426 = arith.cmpi slt, %425, %11 : vector<8x1xi32>
    %cst_159 = arith.constant 1.000000e+00 : f32
    %cst_160 = arith.constant 0.000000e+00 : f32
    %427 = vector.broadcast %cst_159 : f32 to vector<8x1xf32>
    %428 = vector.broadcast %cst_160 : f32 to vector<8x1xf32>
    %429 = arith.select %426, %427, %428 : vector<8x1xi1>, vector<8x1xf32>
    %430 = vector.broadcast %429 : vector<8x1xf32> to vector<8x32xf32>
    %431 = arith.mulf %430, %424 : vector<8x32xf32>
    %cst_161 = arith.constant 1.000000e+00 : f32
    %432 = vector.broadcast %cst_161 : f32 to vector<8x1xf32>
    %433 = arith.subf %432, %429 : vector<8x1xf32>
    %434 = vector.broadcast %433 : vector<8x1xf32> to vector<8x32xf32>
    %435 = arith.mulf %434, %390 : vector<8x32xf32>
    %436 = arith.addf %431, %435 : vector<8x32xf32>
    %c0_162 = arith.constant 0 : index
    %c0_163 = arith.constant 0 : index
    %437 = vector.load %arg13[%c0_162, %c0_163] : memref<8x32xf32, #tpu.memory_space<vmem>>, vector<8x32xf32>
    tpu.vector_store %arg13[%c0_162, %c0_163], %436 {strides = array<i32>} : memref<8x32xf32, #tpu.memory_space<vmem>>, vector<8x32xf32>,
    %438 = vector.broadcast %429 : vector<8x1xf32> to vector<8x32xf32>
    %439 = arith.mulf %438, %424 : vector<8x32xf32>
    %440 = arith.index_cast %c7_i32 : i32 to index
    %c0_164 = arith.constant 0 : index
    %c0_165 = arith.constant 0 : index
    %441 = vector.load %arg15[%440, %c0_164, %c0_165] : memref<8x8x32xf32, #tpu.memory_space<vmem>>, vector<1x8x32xf32>
    %442 = vector.shape_cast %441 : vector<1x8x32xf32> to vector<8x32xf32>
    %443 = vector.shape_cast %439 : vector<8x32xf32> to vector<1x8x32xf32>
    tpu.vector_store %arg15[%440, %c0_164, %c0_165], %443 {strides = array<i32>} : memref<8x8x32xf32, #tpu.memory_space<vmem>>, vector<1x8x32xf32>,
    %c8_i32 = arith.constant 8 : i32
    %c0_166 = arith.constant 0 : index
    %c0_167 = arith.constant 0 : index
    %444 = vector.load %arg13[%c0_166, %c0_167] : memref<8x32xf32, #tpu.memory_space<vmem>>, vector<8x32xf32>
    %c0_168 = arith.constant 0 : index
    %c0_169 = arith.constant 0 : index
    %c0_170 = arith.constant 0 : index
    %445 = vector.load %arg15[%c0_168, %c0_169, %c0_170] : memref<8x8x32xf32, #tpu.memory_space<vmem>>, vector<8x8x32xf32>
    %446 = vector.shape_cast %445 : vector<8x8x32xf32> to vector<64x32xf32>
    %c0_171 = arith.constant 0 : index
    %c0_172 = arith.constant 0 : index
    %447 = vector.load %arg7[%c0_171, %c0_172] : memref<32x32xf32, #tpu.memory_space<vmem>>, vector<32x32xf32>
    %cst_173 = arith.constant dense<0.000000e+00> : vector<64x32xf32>
    %448 = tpu.matmul %446, %447, %cst_173 {dimension_numbers = #tpu.dot_dimension_numbers<[1], [0], [0], [1], [0, 0, 1, 1], [], []>} : vector<64x32xf32>, vector<32x32xf32>, vector<64x32xf32> -> vector<64x32xf32>
    %449 = vector.shape_cast %448 : vector<64x32xf32> to vector<8x8x32xf32>
    %c0_174 = arith.constant 0 : index
    %c0_175 = arith.constant 0 : index
    %450 = vector.load %arg8[%c0_174, %c0_175] : memref<32x32xf32, #tpu.memory_space<vmem>>, vector<32x32xf32>
    %cst_176 = arith.constant dense<0.000000e+00> : vector<8x32xf32>
    %451 = tpu.matmul %444, %450, %cst_176 {dimension_numbers = #tpu.dot_dimension_numbers<[1], [0], [0], [1], [0, 0, 1, 1], [], []>} : vector<8x32xf32>, vector<32x32xf32>, vector<8x32xf32> -> vector<8x32xf32>
    %452 = vector.shape_cast %451 : vector<8x32xf32> to vector<1x8x32xf32>
    %453 = vector.broadcast %452 : vector<1x8x32xf32> to vector<8x8x32xf32>
    %454 = arith.addf %449, %453 : vector<8x8x32xf32>
    %455 = arith.negf %454 : vector<8x8x32xf32>
    %456 = math.exp %455 : vector<8x8x32xf32>
    %cst_177 = arith.constant 1.000000e+00 : f32
    %457 = vector.broadcast %cst_177 : f32 to vector<8x8x32xf32>
    %458 = arith.addf %457, %456 : vector<8x8x32xf32>
    %459 = arith.divf %457, %458 : vector<8x8x32xf32>
    %c0_178 = arith.constant 0 : index
    %c0_179 = arith.constant 0 : index
    %460 = vector.load %arg9[%c0_178, %c0_179] : memref<1x32xf32, #tpu.memory_space<vmem>>, vector<1x32xf32>
    %461 = vector.shape_cast %460 : vector<1x32xf32> to vector<1x1x32xf32>
    %462 = vector.broadcast %461 : vector<1x1x32xf32> to vector<8x8x32xf32>
    %463 = arith.mulf %459, %462 : vector<8x8x32xf32>
    %cst_180 = arith.constant dense<0.000000e+00> : vector<8x8xf32>
    %464 = vector.multi_reduction <add>, %463, %cst_180 [2] : vector<8x8x32xf32> to vector<8x8xf32>
    %465 = vector.shape_cast %464 : vector<8x8xf32> to vector<8x8x1xf32>
    %c0_181 = arith.constant 0 : index
    %c0_182 = arith.constant 0 : index
    %c0_183 = arith.constant 0 : index
    %466 = vector.load %arg15[%c0_181, %c0_182, %c0_183] : memref<8x8x32xf32, #tpu.memory_space<vmem>>, vector<8x8x32xf32>
    %467 = vector.broadcast %465 : vector<8x8x1xf32> to vector<8x8x32xf32>
    %468 = arith.mulf %467, %466 : vector<8x8x32xf32>
    %cst_184 = arith.constant dense<0.000000e+00> : vector<8x32xf32>
    %469 = vector.multi_reduction <add>, %468, %cst_184 [0] : vector<8x8x32xf32> to vector<8x32xf32>
    %c0_185 = arith.constant 0 : index
    %c0_186 = arith.constant 0 : index
    %470 = vector.load %arg10[%c0_185, %c0_186] : memref<32x32xf32, #tpu.memory_space<vmem>>, vector<32x32xf32>
    %cst_187 = arith.constant dense<0.000000e+00> : vector<8x32xf32>
    %471 = tpu.matmul %469, %470, %cst_187 {dimension_numbers = #tpu.dot_dimension_numbers<[1], [0], [0], [1], [0, 0, 1, 1], [], []>} : vector<8x32xf32>, vector<32x32xf32>, vector<8x32xf32> -> vector<8x32xf32>
    %c0_188 = arith.constant 0 : index
    %c0_189 = arith.constant 0 : index
    %472 = vector.load %arg11[%c0_188, %c0_189] : memref<32x32xf32, #tpu.memory_space<vmem>>, vector<32x32xf32>
    %cst_190 = arith.constant dense<0.000000e+00> : vector<8x32xf32>
    %473 = tpu.matmul %444, %472, %cst_190 {dimension_numbers = #tpu.dot_dimension_numbers<[1], [0], [0], [1], [0, 0, 1, 1], [], []>} : vector<8x32xf32>, vector<32x32xf32>, vector<8x32xf32> -> vector<8x32xf32>
    %474 = arith.addf %471, %473 : vector<8x32xf32>
    %c0_191 = arith.constant 0 : index
    %c0_192 = arith.constant 0 : index
    %475 = vector.load %arg12[%c0_191, %c0_192] : memref<8x32xf32, #tpu.memory_space<vmem>>, vector<8x32xf32>
    tpu.vector_store %arg12[%c0_191, %c0_192], %474 {strides = array<i32>} : memref<8x32xf32, #tpu.memory_space<vmem>>, vector<8x32xf32>,
    return
  }
  func.func @transform_0(%arg0: i32) -> (i32, i32, i32) {
    %c0_i32 = arith.constant 0 : i32
    %c0_i32_0 = arith.constant 0 : i32
    %c0_i32_1 = arith.constant 0 : i32
    return %c0_i32, %arg0, %c0_i32_0 : i32, i32, i32
  }
  func.func @transform_1(%arg0: i32) -> (i32, i32) {
    %c0_i32 = arith.constant 0 : i32
    %c0_i32_0 = arith.constant 0 : i32
    return %arg0, %c0_i32 : i32, i32
  }
  func.func @transform_2(%arg0: i32) -> (i32, i32) {
    %c0_i32 = arith.constant 0 : i32
    %c0_i32_0 = arith.constant 0 : i32
    %c0_i32_1 = arith.constant 0 : i32
    return %c0_i32, %c0_i32_0 : i32, i32
  }
  func.func @transform_3(%arg0: i32) -> (i32, i32) {
    %c0_i32 = arith.constant 0 : i32
    %c0_i32_0 = arith.constant 0 : i32
    %c0_i32_1 = arith.constant 0 : i32
    return %c0_i32, %c0_i32_0 : i32, i32
  }
  func.func @transform_4(%arg0: i32) -> (i32, i32) {
    %c0_i32 = arith.constant 0 : i32
    %c0_i32_0 = arith.constant 0 : i32
    %c0_i32_1 = arith.constant 0 : i32
    return %c0_i32, %c0_i32_0 : i32, i32
  }
  func.func @transform_5(%arg0: i32) -> (i32, i32) {
    %c0_i32 = arith.constant 0 : i32
    %c0_i32_0 = arith.constant 0 : i32
    %c0_i32_1 = arith.constant 0 : i32
    return %c0_i32, %c0_i32_0 : i32, i32
  }
  func.func @transform_6(%arg0: i32) -> (i32, i32) {
    %c0_i32 = arith.constant 0 : i32
    %c0_i32_0 = arith.constant 0 : i32
    %c0_i32_1 = arith.constant 0 : i32
    return %c0_i32, %c0_i32_0 : i32, i32
  }
  func.func @transform_7(%arg0: i32) -> (i32, i32) {
    %c0_i32 = arith.constant 0 : i32
    %c0_i32_0 = arith.constant 0 : i32
    %c0_i32_1 = arith.constant 0 : i32
    return %c0_i32, %c0_i32_0 : i32, i32
  }
  func.func @transform_8(%arg0: i32) -> (i32, i32) {
    %c0_i32 = arith.constant 0 : i32
    %c0_i32_0 = arith.constant 0 : i32
    %c0_i32_1 = arith.constant 0 : i32
    return %c0_i32, %c0_i32_0 : i32, i32
  }
  func.func @transform_9(%arg0: i32) -> (i32, i32) {
    %c0_i32 = arith.constant 0 : i32
    %c0_i32_0 = arith.constant 0 : i32
    %c0_i32_1 = arith.constant 0 : i32
    return %c0_i32, %c0_i32_0 : i32, i32
  }
  func.func @transform_10(%arg0: i32) -> (i32, i32) {
    %c0_i32 = arith.constant 0 : i32
    %c0_i32_0 = arith.constant 0 : i32
    %c0_i32_1 = arith.constant 0 : i32
    return %c0_i32, %c0_i32_0 : i32, i32
  }
  func.func @transform_11(%arg0: i32) -> (i32, i32) {
    %c0_i32 = arith.constant 0 : i32
    %c0_i32_0 = arith.constant 0 : i32
    return %arg0, %c0_i32 : i32, i32
  }
}

</mosaic_0001>

<llo_original>
// kernel: tpu_custom_call.1
$region0: #{tpu_custom_call.1}
  #allocation0 [shape = 'u32[]', space=smem, size = 0x4, offset = 0x4, fixed_abs, tag = 'smem constant byte address 0x4 - core index']
  #allocation1 [shape = 'u32[72,128]{1,0:T(1,128)}', space=vmem, size = 0x9000, scoped, tag = 'internal scratch']
  #allocation2 [shape = 'f32[8,32]{1,0:T(8,128)}', space=vmem, size = 0x1000, scoped, tag = 'scratch operand']
  #allocation3 [shape = 'f32[8,8,96]{2,1,0:T(8,128)}', space=vmem, size = 0x8000, scoped, tag = 'scratch operand']
  #allocation4 [shape = 'f32[8,8,32]{2,1,0:T(8,128)}', space=vmem, size = 0x8000, scoped, tag = 'scratch operand']
  %s0 = inlined_call_operand.hbm [shape: f32[8,8,32], index: 0, kind: input, shape index: {}]
  %s1 = inlined_call_operand.vmem [shape: s32[8,1], index: 1, kind: input, shape index: {}]
  %s2 = inlined_call_operand.hbm [shape: f32[32,96], index: 2, kind: input, shape index: {}]
  %s3 = inlined_call_operand.hbm [shape: f32[32,96], index: 3, kind: input, shape index: {}]
  %s4 = inlined_call_operand.vmem [shape: f32[1,96], index: 4, kind: input, shape index: {}]
  %s5 = inlined_call_operand.vmem [shape: f32[1,96], index: 5, kind: input, shape index: {}]
  %s6 = inlined_call_operand.hbm [shape: f32[32,32], index: 6, kind: input, shape index: {}]
  %s7 = inlined_call_operand.hbm [shape: f32[32,32], index: 7, kind: input, shape index: {}]
  %s8 = inlined_call_operand.vmem [shape: f32[1,32], index: 8, kind: input, shape index: {}]
  %s9 = inlined_call_operand.hbm [shape: f32[32,32], index: 9, kind: input, shape index: {}]
  %s10 = inlined_call_operand.hbm [shape: f32[32,32], index: 10, kind: input, shape index: {}]
  %s11 = inlined_call_operand.hbm [shape: f32[8,32], index: 11, kind: output, shape index: {}]
  %s12 = sld [smem:[#allocation0]]
  $region82: #{tpu_custom_call.1} parent=0
    _
  %s14 = ssub.s32 1, %s12
  %s15 = scalar_select 0, %s14, %s12
  $region1: #{tpu_custom_call.1} parent=0
    #allocation5 [shape = 'u8[32768]{0}', space=vmem, size = 0x8000, scoped, tag = 'input window, operand 0, single buffered']
    #allocation6 [shape = 's32[1]{0}', space=sflag, size = 0x4, scoped, tag = 'scoped memory for tpu_custom_call.1']
    #allocation7 [shape = 's32[1]{0}', space=sflag, size = 0x4, scoped, tag = 'scoped memory for tpu_custom_call.1']
    #allocation8 [shape = 'u8[16384]{0}', space=vmem, size = 0x4000, scoped, tag = 'input window, operand 2, single buffered']
    #allocation9 [shape = 's32[1]{0}', space=sflag, size = 0x4, scoped, tag = 'scoped memory for tpu_custom_call.1']
    #allocation10 [shape = 'u8[16384]{0}', space=vmem, size = 0x4000, scoped, tag = 'input window, operand 3, single buffered']
    #allocation11 [shape = 'u8[16384]{0}', space=vmem, size = 0x4000, scoped, tag = 'input window, operand 6, single buffered']
    #allocation12 [shape = 's32[1]{0}', space=sflag, size = 0x4, scoped, tag = 'scoped memory for tpu_custom_call.1']
    #allocation13 [shape = 'u8[16384]{0}', space=vmem, size = 0x4000, scoped, tag = 'input window, operand 7, single buffered']
    #allocation14 [shape = 'u8[16384]{0}', space=vmem, size = 0x4000, scoped, tag = 'input window, operand 9, single buffered']
    #allocation15 [shape = 's32[1]{0}', space=sflag, size = 0x4, scoped, tag = 'scoped memory for tpu_custom_call.1']
    #allocation16 [shape = 'u8[16384]{0}', space=vmem, size = 0x4000, scoped, tag = 'input window, operand 10, single buffered']
    #allocation17 [shape = 'u8[4096]{0}', space=vmem, size = 0x1000, scoped, tag = 'output window, operand 0, single buffered']
    %16 = vsyncpa [#allocation6], 0
    %17 = vsyncpa [#allocation9], 0
    %18 = vsyncpa [#allocation12], 0
    %19 = vsyncpa [#allocation15], 0
    %20 = vsyncpa [#allocation7], 0
    // Predicated region
    $region2: #{tpu_custom_call.1} parent=1 // pred_check
      _
    $region3: #{tpu_custom_call.1} parent=1 // pred_check_branch
      %22 = sbr.rel (0) target = $region5
    $region4: #{tpu_custom_call.1} parent=1 // pred_region
      %24 = vsyncadd [#allocation6], 0
      %s25 = sshll.u32 %s0, 4
      %s26 = int_to_ptr.hbm [resolvable:$true] %s25
      %s27 = sshll.u32 [#allocation5], 4
      %s28 = int_to_ptr.vmem [resolvable:$true] %s27
      %33 = dma.hbm_to_vmem [thread:$0]  %s26, 1024, %s28, [#allocation6], 128, 128, 8
    $region5: #{tpu_custom_call.1} parent=1 // pred_fallthru
      _
    // Predicated region
    $region6: #{tpu_custom_call.1} parent=1 // pred_check
      _
    $region7: #{tpu_custom_call.1} parent=1 // pred_check_branch
      %35 = sbr.rel (0) target = $region9
    $region8: #{tpu_custom_call.1} parent=1 // pred_region
      _
    $region9: #{tpu_custom_call.1} parent=1 // pred_fallthru
      _
    // Predicated region
    $region10: #{tpu_custom_call.1} parent=1 // pred_check
      _
    $region11: #{tpu_custom_call.1} parent=1 // pred_check_branch
      %37 = sbr.rel (0) target = $region13
    $region12: #{tpu_custom_call.1} parent=1 // pred_region
      %39 = vsyncadd [#allocation9], 0
      %s40 = sshll.u32 %s2, 4
      %s41 = int_to_ptr.hbm [resolvable:$true] %s40
      %s42 = sshll.u32 [#allocation8], 4
      %s43 = int_to_ptr.vmem [resolvable:$true] %s42
      %48 = dma.hbm_to_vmem [thread:$0]  %s41, 512, %s43, [#allocation9], 128, 128, 8
    $region13: #{tpu_custom_call.1} parent=1 // pred_fallthru
      _
    // Predicated region
    $region14: #{tpu_custom_call.1} parent=1 // pred_check
      _
    $region15: #{tpu_custom_call.1} parent=1 // pred_check_branch
      %50 = sbr.rel (0) target = $region17
    $region16: #{tpu_custom_call.1} parent=1 // pred_region
      %52 = vsyncadd [#allocation9], 0
      %s53 = sshll.u32 %s3, 4
      %s54 = int_to_ptr.hbm [resolvable:$true] %s53
      %s55 = sshll.u32 [#allocation10], 4
      %s56 = int_to_ptr.vmem [resolvable:$true] %s55
      %61 = dma.hbm_to_vmem [thread:$0]  %s54, 512, %s56, [#allocation9], 128, 128, 8
    $region17: #{tpu_custom_call.1} parent=1 // pred_fallthru
      _
    // Predicated region
    $region18: #{tpu_custom_call.1} parent=1 // pred_check
      _
    $region19: #{tpu_custom_call.1} parent=1 // pred_check_branch
      %63 = sbr.rel (0) target = $region21
    $region20: #{tpu_custom_call.1} parent=1 // pred_region
      _
    $region21: #{tpu_custom_call.1} parent=1 // pred_fallthru
      _
    // Predicated region
    $region22: #{tpu_custom_call.1} parent=1 // pred_check
      _
    $region23: #{tpu_custom_call.1} parent=1 // pred_check_branch
      %65 = sbr.rel (0) target = $region25
    $region24: #{tpu_custom_call.1} parent=1 // pred_region
      _
    $region25: #{tpu_custom_call.1} parent=1 // pred_fallthru
      _
    // Predicated region
    $region26: #{tpu_custom_call.1} parent=1 // pred_check
      _
    $region27: #{tpu_custom_call.1} parent=1 // pred_check_branch
      %67 = sbr.rel (0) target = $region29
    $region28: #{tpu_custom_call.1} parent=1 // pred_region
      %69 = vsyncadd [#allocation12], 0
      %s70 = sshll.u32 %s6, 4
      %s71 = int_to_ptr.hbm [resolvable:$true] %s70
      %s72 = sshll.u32 [#allocation11], 4
      %s73 = int_to_ptr.vmem [resolvable:$true] %s72
      %78 = dma.hbm_to_vmem [thread:$0]  %s71, 512, %s73, [#allocation12], 128, 128, 8
    $region29: #{tpu_custom_call.1} parent=1 // pred_fallthru
      _
    // Predicated region
    $region30: #{tpu_custom_call.1} parent=1 // pred_check
      _
    $region31: #{tpu_custom_call.1} parent=1 // pred_check_branch
      %80 = sbr.rel (0) target = $region33
    $region32: #{tpu_custom_call.1} parent=1 // pred_region
      %82 = vsyncadd [#allocation12], 0
      %s83 = sshll.u32 %s7, 4
      %s84 = int_to_ptr.hbm [resolvable:$true] %s83
      %s85 = sshll.u32 [#allocation13], 4
      %s86 = int_to_ptr.vmem [resolvable:$true] %s85
      %91 = dma.hbm_to_vmem [thread:$0]  %s84, 512, %s86, [#allocation12], 128, 128, 8
    $region33: #{tpu_custom_call.1} parent=1 // pred_fallthru
      _
    // Predicated region
    $region34: #{tpu_custom_call.1} parent=1 // pred_check
      _
    $region35: #{tpu_custom_call.1} parent=1 // pred_check_branch
      %93 = sbr.rel (0) target = $region37
    $region36: #{tpu_custom_call.1} parent=1 // pred_region
      _
    $region37: #{tpu_custom_call.1} parent=1 // pred_fallthru
      _
    // Predicated region
    $region38: #{tpu_custom_call.1} parent=1 // pred_check
      _
    $region39: #{tpu_custom_call.1} parent=1 // pred_check_branch
      %95 = sbr.rel (0) target = $region41
    $region40: #{tpu_custom_call.1} parent=1 // pred_region
      %97 = vsyncadd [#allocation15], 0
      %s98 = sshll.u32 %s9, 4
      %s99 = int_to_ptr.hbm [resolvable:$true] %s98
      %s100 = sshll.u32 [#allocation14], 4
      %s101 = int_to_ptr.vmem [resolvable:$true] %s100
      %106 = dma.hbm_to_vmem [thread:$0]  %s99, 512, %s101, [#allocation15], 128, 128, 8
    $region41: #{tpu_custom_call.1} parent=1 // pred_fallthru
      _
    // Predicated region
    $region42: #{tpu_custom_call.1} parent=1 // pred_check
      _
    $region43: #{tpu_custom_call.1} parent=1 // pred_check_branch
      %108 = sbr.rel (0) target = $region45
    $region44: #{tpu_custom_call.1} parent=1 // pred_region
      %110 = vsyncadd [#allocation15], 0
      %s111 = sshll.u32 %s10, 4
      %s112 = int_to_ptr.hbm [resolvable:$true] %s111
      %s113 = sshll.u32 [#allocation16], 4
      %s114 = int_to_ptr.vmem [resolvable:$true] %s113
      %119 = dma.hbm_to_vmem [thread:$0]  %s112, 512, %s114, [#allocation15], 128, 128, 8
    $region45: #{tpu_custom_call.1} parent=1 // pred_fallthru
      _
    // Predicated region
    $region46: #{tpu_custom_call.1} parent=1 // pred_check
      _
    $region47: #{tpu_custom_call.1} parent=1 // pred_check_branch
      %121 = sbr.rel (0) target = $region49
    $region48: #{tpu_custom_call.1} parent=1 // pred_region
      %123 = dma.done [#allocation6], 1024
    $region49: #{tpu_custom_call.1} parent=1 // pred_fallthru
      _
    // Predicated region
    $region50: #{tpu_custom_call.1} parent=1 // pred_check
      _
    $region51: #{tpu_custom_call.1} parent=1 // pred_check_branch
      %125 = sbr.rel (0) target = $region53
    $region52: #{tpu_custom_call.1} parent=1 // pred_region
      %127 = dma.done [#allocation9], 512
    $region53: #{tpu_custom_call.1} parent=1 // pred_fallthru
      _
    // Predicated region
    $region54: #{tpu_custom_call.1} parent=1 // pred_check
      _
    $region55: #{tpu_custom_call.1} parent=1 // pred_check_branch
      %129 = sbr.rel (0) target = $region57
    $region56: #{tpu_custom_call.1} parent=1 // pred_region
      %131 = dma.done [#allocation9], 512
    $region57: #{tpu_custom_call.1} parent=1 // pred_fallthru
      _
    // Predicated region
    $region58: #{tpu_custom_call.1} parent=1 // pred_check
      _
    $region59: #{tpu_custom_call.1} parent=1 // pred_check_branch
      %133 = sbr.rel (0) target = $region61
    $region60: #{tpu_custom_call.1} parent=1 // pred_region
      %135 = dma.done [#allocation12], 512
    $region61: #{tpu_custom_call.1} parent=1 // pred_fallthru
      _
    // Predicated region
    $region62: #{tpu_custom_call.1} parent=1 // pred_check
      _
    $region63: #{tpu_custom_call.1} parent=1 // pred_check_branch
      %137 = sbr.rel (0) target = $region65
    $region64: #{tpu_custom_call.1} parent=1 // pred_region
      %139 = dma.done [#allocation12], 512
    $region65: #{tpu_custom_call.1} parent=1 // pred_fallthru
      _
    // Predicated region
    $region66: #{tpu_custom_call.1} parent=1 // pred_check
      _
    $region67: #{tpu_custom_call.1} parent=1 // pred_check_branch
      %141 = sbr.rel (0) target = $region69
    $region68: #{tpu_custom_call.1} parent=1 // pred_region
      %143 = dma.done [#allocation15], 512
    $region69: #{tpu_custom_call.1} parent=1 // pred_fallthru
      _
    // Predicated region
    $region70: #{tpu_custom_call.1} parent=1 // pred_check
      _
    $region71: #{tpu_custom_call.1} parent=1 // pred_check_branch
      %145 = sbr.rel (0) target = $region73
    $region72: #{tpu_custom_call.1} parent=1 // pred_region
      %147 = dma.done [#allocation15], 512
    $region73: #{tpu_custom_call.1} parent=1 // pred_fallthru
      _
    %v148 = vld [vmem:[#allocation5] sm:$0xff]
    %v149 = vld [vmem:[#allocation5 + $0x8] sm:$0xff]
    %v150 = vld [vmem:[#allocation5 + $0x10] sm:$0xff]
    %v151 = vld [vmem:[#allocation5 + $0x18] sm:$0xff]
    %v152 = vld [vmem:[#allocation5 + $0x20] sm:$0xff]
    %v153 = vld [vmem:[#allocation5 + $0x28] sm:$0xff]
    %v154 = vld [vmem:[#allocation5 + $0x30] sm:$0xff]
    %v155 = vld [vmem:[#allocation5 + $0x38] sm:$0xff]
    %v156 = vld [vmem:[#allocation8] sm:$0xff]
    %v157 = vld [vmem:[#allocation8 + $0x8] sm:$0xff]
    %v158 = vld [vmem:[#allocation8 + $0x10] sm:$0xff]
    %v159 = vld [vmem:[#allocation8 + $0x18] sm:$0xff]
    %v160 = vld [vmem:[%s4] sm:$0x1]
    %v162 = vperm.slane %v160, 0
    %vm164 = vcmask 261120
    %v166 = vsel %vm164, %v148, 0
    %v169 = vsel %vm164, %v149, 0
    %v172 = vsel %vm164, %v150, 0
    %v175 = vsel %vm164, %v151, 0
    %v178 = vsel %vm164, %v152, 0
    %v181 = vsel %vm164, %v153, 0
    %v184 = vsel %vm164, %v154, 0
    %v187 = vsel %vm164, %v155, 0
    %189 = vmatpush.msra.mxu0 0.0
    %190 = vmatpush.msra.mxu0 0.0
    %191 = vmatpush.msra.mxu0 0.0
    %192 = vmatpush.msra.mxu0 0.0
    %193 = vmatpush.msra.mxu0 0.0
    %194 = vmatpush.msra.mxu0 0.0
    %195 = vmatpush.msra.mxu0 0.0
    %196 = vmatpush.msra.mxu0 0.0
    %197 = vmatpush.msra.mxu0 0.0
    %198 = vmatpush.msra.mxu0 0.0
    %199 = vmatpush.msra.mxu0 0.0
    %200 = vmatpush.msra.mxu0 0.0
    %201 = vmatpush.msra.mxu0 %v159
    %202 = vmatpush.msra.mxu0 %v158
    %203 = vmatpush.msra.mxu0 %v157
    %204 = vmatpush.msra.mxu0 %v156
    %205 = vmatmul.f32.gmra.mxu0 %v166
    %v206 = vpop.f32.mrf.mxu0
    %v207 = vadd.f32 %v162, %v206
    %208 = vmatmul.f32.gmra.mxu0 %v169
    %v209 = vpop.f32.mrf.mxu0
    %v210 = vadd.f32 %v162, %v209
    %211 = vmatmul.f32.gmra.mxu0 %v172
    %v212 = vpop.f32.mrf.mxu0
    %v213 = vadd.f32 %v162, %v212
    %214 = vmatmul.f32.gmra.mxu0 %v175
    %v215 = vpop.f32.mrf.mxu0
    %v216 = vadd.f32 %v162, %v215
    %217 = vmatmul.f32.gmra.mxu0 %v178
    %v218 = vpop.f32.mrf.mxu0
    %v219 = vadd.f32 %v162, %v218
    %220 = vmatmul.f32.gmra.mxu0 %v181
    %v221 = vpop.f32.mrf.mxu0
    %v222 = vadd.f32 %v162, %v221
    %223 = vmatmul.f32.gmra.mxu0 %v184
    %v224 = vpop.f32.mrf.mxu0
    %v225 = vadd.f32 %v162, %v224
    %226 = vmatmul.f32.gmra.mxu0 %v187
    %v227 = vpop.f32.mrf.mxu0
    %v228 = vadd.f32 %v162, %v227
    %229 = vdwg.mxu0
    %vm230 = vcmask 785408
    %231 = vst.msk [vmem:[#allocation3] sm:$0xff] %vm230, %v207
    %232 = vst.msk [vmem:[#allocation3 + $0x8] sm:$0xff] %vm230, %v210
    %233 = vst.msk [vmem:[#allocation3 + $0x10] sm:$0xff] %vm230, %v213
    %234 = vst.msk [vmem:[#allocation3 + $0x18] sm:$0xff] %vm230, %v216
    %235 = vst.msk [vmem:[#allocation3 + $0x20] sm:$0xff] %vm230, %v219
    %236 = vst.msk [vmem:[#allocation3 + $0x28] sm:$0xff] %vm230, %v222
    %237 = vst.msk [vmem:[#allocation3 + $0x30] sm:$0xff] %vm230, %v225
    %238 = vst.msk [vmem:[#allocation3 + $0x38] sm:$0xff] %vm230, %v228
    %239 = vst.msk [vmem:[#allocation2] sm:$0xff] %vm164, 0.0
    %v240 = vld [vmem:[%s1] sm:$0xff]
    %v241 = vld [vmem:[#allocation2] sm:$0xff]
    %v242 = vld [vmem:[#allocation3] sm:$0xff]
    %v243 = vld [vmem:[#allocation10] sm:$0xff]
    %v244 = vld [vmem:[#allocation10 + $0x8] sm:$0xff]
    %v245 = vld [vmem:[#allocation10 + $0x10] sm:$0xff]
    %v246 = vld [vmem:[#allocation10 + $0x18] sm:$0xff]
    %v247 = vld [vmem:[%s5] sm:$0x1]
    %v249 = vperm.slane %v247, 0
    %v252 = vsel %vm164, %v241, 0
    %254 = vmatpush.msra.mxu0 0.0
    %255 = vmatpush.msra.mxu0 0.0
    %256 = vmatpush.msra.mxu0 0.0
    %257 = vmatpush.msra.mxu0 0.0
    %258 = vmatpush.msra.mxu0 0.0
    %259 = vmatpush.msra.mxu0 0.0
    %260 = vmatpush.msra.mxu0 0.0
    %261 = vmatpush.msra.mxu0 0.0
    %262 = vmatpush.msra.mxu0 0.0
    %263 = vmatpush.msra.mxu0 0.0
    %264 = vmatpush.msra.mxu0 0.0
    %265 = vmatpush.msra.mxu0 0.0
    %266 = vmatpush.msra.mxu0 %v246
    %267 = vmatpush.msra.mxu0 %v245
    %268 = vmatpush.msra.mxu0 %v244
    %269 = vmatpush.msra.mxu0 %v243
    %270 = vmatmul.f32.gmra.mxu0 %v252
    %v271 = vpop.f32.mrf.mxu0
    %v272 = vadd.f32 %v249, %v271
    %273 = vdwg.mxu0
    %v274 = vadd.f32 %v242, %v272
    %v275 = vxor.u32 %v274, 2147483648
    %v276 = vmul.f32 %v275, 1.442695
    %v277 = vpow.pop %v276
    %v278 = vadd.f32 %v277, 1.0
    %v279 = vrcp.pop %v278
    %v280 = vmul.f32 %v278, %v279
    %v281 = vsub.f32 1.0, %v280
    %v282 = vmul.f32 %v279, %v281
    %v283 = vadd.f32 %v279, %v282
    %vm284 = vweird.f32 %v278
    %vm285 = vweird.f32 %v279
    %vm286 = vmor %vm284, %vm285
    %v287 = vsel %vm286, %v279, %v283
    %v288 = vand.u32 2147483647, %v278
    %vm289 = vcmp.eq.f32.partialorder %v288, 8.507059e+37
    %v290 = vand.u32 %v278, 2147483648
    %v291 = vor.u32 1.1754944e-38, %v290
    %v292 = vsel %vm289, %v291, %v287
    %v293 = vmul.f32 1.0, %v292
    %295 = vrot.lane.b32.xlu0 %v272, 64
    %v296 = vpop.permute.xlu0 %295
    %v298 = vmul.f32 %v293, %v296
    %300 = vrot.lane.b32.xlu0 %v298, 64
    %v301 = vpop.permute.xlu0 %300
    %v303 = vadd.f32 %v242, %v301
    %v304 = vtanh.pop %v303
    %v305 = vsub.f32 1.0, %v293
    %307 = vrot.lane.b32.xlu0 %v304, 96
    %v308 = vpop.permute.xlu0 %307
    %v310 = vmul.f32 %v305, %v308
    %311 = vrot.lane.b32.xlu0 %v241, 32
    %v312 = vpop.permute.xlu0 %311
    %v314 = vmul.f32 %v293, %v312
    %v315 = vadd.f32 %v310, %v314
    %vm316 = vcmp.gt.s32.totalorder %v240, 0
    %v317 = vsel %vm316, 1.0, 0.0
    %319 = vset.pattern.permute.xlu0 0
    %320 = vperm.xlu0 %319, %v317
    %v321 = vpop.permute.xlu0 %320
    %v323 = vmul.f32 %v321, %v315
    %v324 = vsub.f32 1.0, %v317
    %326 = vset.pattern.permute.xlu0 0
    %327 = vperm.xlu0 %326, %v324
    %v328 = vpop.permute.xlu0 %327
    %v330 = vmul.f32 %v328, %v241
    %332 = vrot.lane.b32.xlu0 %v330, 32
    %v333 = vpop.permute.xlu0 %332
    %v335 = vadd.f32 %v323, %v333
    %337 = vrot.lane.b32.xlu0 %v335, 96
    %v338 = vpop.permute.xlu0 %337
    %340 = vst.msk [vmem:[#allocation2] sm:$0xff] %vm164, %v338
    %342 = vrot.lane.b32.xlu0 %v323, 96
    %v343 = vpop.permute.xlu0 %342
    %345 = vst.msk [vmem:[#allocation4] sm:$0xff] %vm164, %v343
    %v346 = vld [vmem:[#allocation2] sm:$0xff]
    %s347 = scalar_lea.vmem [#allocation3], 8
    %v348 = vld [vmem:[%s347] sm:$0xff]
    %v349 = vld [vmem:[#allocation10] sm:$0xff]
    %v350 = vld [vmem:[#allocation10 + $0x8] sm:$0xff]
    %v351 = vld [vmem:[#allocation10 + $0x10] sm:$0xff]
    %v352 = vld [vmem:[#allocation10 + $0x18] sm:$0xff]
    %v353 = vld [vmem:[%s5] sm:$0x1]
    %v355 = vperm.slane %v353, 0
    %v358 = vsel %vm164, %v346, 0
    %360 = vmatpush.msra.mxu0 0.0
    %361 = vmatpush.msra.mxu0 0.0
    %362 = vmatpush.msra.mxu0 0.0
    %363 = vmatpush.msra.mxu0 0.0
    %364 = vmatpush.msra.mxu0 0.0
    %365 = vmatpush.msra.mxu0 0.0
    %366 = vmatpush.msra.mxu0 0.0
    %367 = vmatpush.msra.mxu0 0.0
    %368 = vmatpush.msra.mxu0 0.0
    %369 = vmatpush.msra.mxu0 0.0
    %370 = vmatpush.msra.mxu0 0.0
    %371 = vmatpush.msra.mxu0 0.0
    %372 = vmatpush.msra.mxu0 %v352
    %373 = vmatpush.msra.mxu0 %v351
    %374 = vmatpush.msra.mxu0 %v350
    %375 = vmatpush.msra.mxu0 %v349
    %376 = vmatmul.f32.gmra.mxu0 %v358
    %v377 = vpop.f32.mrf.mxu0
    %v378 = vadd.f32 %v355, %v377
    %379 = vdwg.mxu0
    %v380 = vadd.f32 %v348, %v378
    %v381 = vxor.u32 %v380, 2147483648
    %v382 = vmul.f32 %v381, 1.442695
    %v383 = vpow.pop %v382
    %v384 = vadd.f32 %v383, 1.0
    %v385 = vrcp.pop %v384
    %v386 = vmul.f32 %v384, %v385
    %v387 = vsub.f32 1.0, %v386
    %v388 = vmul.f32 %v385, %v387
    %v389 = vadd.f32 %v385, %v388
    %vm390 = vweird.f32 %v384
    %vm391 = vweird.f32 %v385
    %vm392 = vmor %vm390, %vm391
    %v393 = vsel %vm392, %v385, %v389
    %v394 = vand.u32 2147483647, %v384
    %vm395 = vcmp.eq.f32.partialorder %v394, 8.507059e+37
    %v396 = vand.u32 %v384, 2147483648
    %v397 = vor.u32 1.1754944e-38, %v396
    %v398 = vsel %vm395, %v397, %v393
    %v399 = vmul.f32 1.0, %v398
    %401 = vrot.lane.b32.xlu0 %v378, 64
    %v402 = vpop.permute.xlu0 %401
    %v404 = vmul.f32 %v399, %v402
    %406 = vrot.lane.b32.xlu0 %v404, 64
    %v407 = vpop.permute.xlu0 %406
    %v409 = vadd.f32 %v348, %v407
    %v410 = vtanh.pop %v409
    %v411 = vsub.f32 1.0, %v399
    %413 = vrot.lane.b32.xlu0 %v410, 96
    %v414 = vpop.permute.xlu0 %413
    %v416 = vmul.f32 %v411, %v414
    %417 = vrot.lane.b32.xlu0 %v346, 32
    %v418 = vpop.permute.xlu0 %417
    %v420 = vmul.f32 %v399, %v418
    %v421 = vadd.f32 %v416, %v420
    %vm422 = vcmp.gt.s32.totalorder %v240, 1
    %v423 = vsel %vm422, 1.0, 0.0
    %425 = vset.pattern.permute.xlu0 0
    %426 = vperm.xlu0 %425, %v423
    %v427 = vpop.permute.xlu0 %426
    %v429 = vmul.f32 %v427, %v421
    %v430 = vsub.f32 1.0, %v423
    %432 = vset.pattern.permute.xlu0 0
    %433 = vperm.xlu0 %432, %v430
    %v434 = vpop.permute.xlu0 %433
    %v436 = vmul.f32 %v434, %v346
    %438 = vrot.lane.b32.xlu0 %v436, 32
    %v439 = vpop.permute.xlu0 %438
    %v441 = vadd.f32 %v429, %v439
    %443 = vrot.lane.b32.xlu0 %v441, 96
    %v444 = vpop.permute.xlu0 %443
    %446 = vst.msk [vmem:[#allocation2] sm:$0xff] %vm164, %v444
    %448 = vrot.lane.b32.xlu0 %v429, 96
    %v449 = vpop.permute.xlu0 %448
    %s451 = scalar_lea.vmem [#allocation4], 8
    %452 = vst.msk [vmem:[%s451] sm:$0xff] %vm164, %v449
    %v453 = vld [vmem:[#allocation2] sm:$0xff]
    %s454 = scalar_lea.vmem [#allocation3], 16
    %v455 = vld [vmem:[%s454] sm:$0xff]
    %v456 = vld [vmem:[#allocation10] sm:$0xff]
    %v457 = vld [vmem:[#allocation10 + $0x8] sm:$0xff]
    %v458 = vld [vmem:[#allocation10 + $0x10] sm:$0xff]
    %v459 = vld [vmem:[#allocation10 + $0x18] sm:$0xff]
    %v460 = vld [vmem:[%s5] sm:$0x1]
    %v462 = vperm.slane %v460, 0
    %v465 = vsel %vm164, %v453, 0
    %467 = vmatpush.msra.mxu0 0.0
    %468 = vmatpush.msra.mxu0 0.0
    %469 = vmatpush.msra.mxu0 0.0
    %470 = vmatpush.msra.mxu0 0.0
    %471 = vmatpush.msra.mxu0 0.0
    %472 = vmatpush.msra.mxu0 0.0
    %473 = vmatpush.msra.mxu0 0.0
    %474 = vmatpush.msra.mxu0 0.0
    %475 = vmatpush.msra.mxu0 0.0
    %476 = vmatpush.msra.mxu0 0.0
    %477 = vmatpush.msra.mxu0 0.0
    %478 = vmatpush.msra.mxu0 0.0
    %479 = vmatpush.msra.mxu0 %v459
    %480 = vmatpush.msra.mxu0 %v458
    %481 = vmatpush.msra.mxu0 %v457
    %482 = vmatpush.msra.mxu0 %v456
    %483 = vmatmul.f32.gmra.mxu0 %v465
    %v484 = vpop.f32.mrf.mxu0
    %v485 = vadd.f32 %v462, %v484
    %486 = vdwg.mxu0
    %v487 = vadd.f32 %v455, %v485
    %v488 = vxor.u32 %v487, 2147483648
    %v489 = vmul.f32 %v488, 1.442695
    %v490 = vpow.pop %v489
    %v491 = vadd.f32 %v490, 1.0
    %v492 = vrcp.pop %v491
    %v493 = vmul.f32 %v491, %v492
    %v494 = vsub.f32 1.0, %v493
    %v495 = vmul.f32 %v492, %v494
    %v496 = vadd.f32 %v492, %v495
    %vm497 = vweird.f32 %v491
    %vm498 = vweird.f32 %v492
    %vm499 = vmor %vm497, %vm498
    %v500 = vsel %vm499, %v492, %v496
    %v501 = vand.u32 2147483647, %v491
    %vm502 = vcmp.eq.f32.partialorder %v501, 8.507059e+37
    %v503 = vand.u32 %v491, 2147483648
    %v504 = vor.u32 1.1754944e-38, %v503
    %v505 = vsel %vm502, %v504, %v500
    %v506 = vmul.f32 1.0, %v505
    %508 = vrot.lane.b32.xlu0 %v485, 64
    %v509 = vpop.permute.xlu0 %508
    %v511 = vmul.f32 %v506, %v509
    %513 = vrot.lane.b32.xlu0 %v511, 64
    %v514 = vpop.permute.xlu0 %513
    %v516 = vadd.f32 %v455, %v514
    %v517 = vtanh.pop %v516
    %v518 = vsub.f32 1.0, %v506
    %520 = vrot.lane.b32.xlu0 %v517, 96
    %v521 = vpop.permute.xlu0 %520
    %v523 = vmul.f32 %v518, %v521
    %524 = vrot.lane.b32.xlu0 %v453, 32
    %v525 = vpop.permute.xlu0 %524
    %v527 = vmul.f32 %v506, %v525
    %v528 = vadd.f32 %v523, %v527
    %vm529 = vcmp.gt.s32.totalorder %v240, 2
    %v530 = vsel %vm529, 1.0, 0.0
    %532 = vset.pattern.permute.xlu0 0
    %533 = vperm.xlu0 %532, %v530
    %v534 = vpop.permute.xlu0 %533
    %v536 = vmul.f32 %v534, %v528
    %v537 = vsub.f32 1.0, %v530
    %539 = vset.pattern.permute.xlu0 0
    %540 = vperm.xlu0 %539, %v537
    %v541 = vpop.permute.xlu0 %540
    %v543 = vmul.f32 %v541, %v453
    %545 = vrot.lane.b32.xlu0 %v543, 32
    %v546 = vpop.permute.xlu0 %545
    %v548 = vadd.f32 %v536, %v546
    %550 = vrot.lane.b32.xlu0 %v548, 96
    %v551 = vpop.permute.xlu0 %550
    %553 = vst.msk [vmem:[#allocation2] sm:$0xff] %vm164, %v551
    %555 = vrot.lane.b32.xlu0 %v536, 96
    %v556 = vpop.permute.xlu0 %555
    %s558 = scalar_lea.vmem [#allocation4], 16
    %559 = vst.msk [vmem:[%s558] sm:$0xff] %vm164, %v556
    %v560 = vld [vmem:[#allocation2] sm:$0xff]
    %s561 = scalar_lea.vmem [#allocation3], 24
    %v562 = vld [vmem:[%s561] sm:$0xff]
    %v563 = vld [vmem:[#allocation10] sm:$0xff]
    %v564 = vld [vmem:[#allocation10 + $0x8] sm:$0xff]
    %v565 = vld [vmem:[#allocation10 + $0x10] sm:$0xff]
    %v566 = vld [vmem:[#allocation10 + $0x18] sm:$0xff]
    %v567 = vld [vmem:[%s5] sm:$0x1]
    %v569 = vperm.slane %v567, 0
    %v572 = vsel %vm164, %v560, 0
    %574 = vmatpush.msra.mxu0 0.0
    %575 = vmatpush.msra.mxu0 0.0
    %576 = vmatpush.msra.mxu0 0.0
    %577 = vmatpush.msra.mxu0 0.0
    %578 = vmatpush.msra.mxu0 0.0
    %579 = vmatpush.msra.mxu0 0.0
    %580 = vmatpush.msra.mxu0 0.0
    %581 = vmatpush.msra.mxu0 0.0
    %582 = vmatpush.msra.mxu0 0.0
    %583 = vmatpush.msra.mxu0 0.0
    %584 = vmatpush.msra.mxu0 0.0
    %585 = vmatpush.msra.mxu0 0.0
    %586 = vmatpush.msra.mxu0 %v566
    %587 = vmatpush.msra.mxu0 %v565
    %588 = vmatpush.msra.mxu0 %v564
    %589 = vmatpush.msra.mxu0 %v563
    %590 = vmatmul.f32.gmra.mxu0 %v572
    %v591 = vpop.f32.mrf.mxu0
    %v592 = vadd.f32 %v569, %v591
    %593 = vdwg.mxu0
    %v594 = vadd.f32 %v562, %v592
    %v595 = vxor.u32 %v594, 2147483648
    %v596 = vmul.f32 %v595, 1.442695
    %v597 = vpow.pop %v596
    %v598 = vadd.f32 %v597, 1.0
    %v599 = vrcp.pop %v598
    %v600 = vmul.f32 %v598, %v599
    %v601 = vsub.f32 1.0, %v600
    %v602 = vmul.f32 %v599, %v601
    %v603 = vadd.f32 %v599, %v602
    %vm604 = vweird.f32 %v598
    %vm605 = vweird.f32 %v599
    %vm606 = vmor %vm604, %vm605
    %v607 = vsel %vm606, %v599, %v603
    %v608 = vand.u32 2147483647, %v598
    %vm609 = vcmp.eq.f32.partialorder %v608, 8.507059e+37
    %v610 = vand.u32 %v598, 2147483648
    %v611 = vor.u32 1.1754944e-38, %v610
    %v612 = vsel %vm609, %v611, %v607
    %v613 = vmul.f32 1.0, %v612
    %615 = vrot.lane.b32.xlu0 %v592, 64
    %v616 = vpop.permute.xlu0 %615
    %v618 = vmul.f32 %v613, %v616
    %620 = vrot.lane.b32.xlu0 %v618, 64
    %v621 = vpop.permute.xlu0 %620
    %v623 = vadd.f32 %v562, %v621
    %v624 = vtanh.pop %v623
    %v625 = vsub.f32 1.0, %v613
    %627 = vrot.lane.b32.xlu0 %v624, 96
    %v628 = vpop.permute.xlu0 %627
    %v630 = vmul.f32 %v625, %v628
    %631 = vrot.lane.b32.xlu0 %v560, 32
    %v632 = vpop.permute.xlu0 %631
    %v634 = vmul.f32 %v613, %v632
    %v635 = vadd.f32 %v630, %v634
    %vm636 = vcmp.gt.s32.totalorder %v240, 3
    %v637 = vsel %vm636, 1.0, 0.0
    %639 = vset.pattern.permute.xlu0 0
    %640 = vperm.xlu0 %639, %v637
    %v641 = vpop.permute.xlu0 %640
    %v643 = vmul.f32 %v641, %v635
    %v644 = vsub.f32 1.0, %v637
    %646 = vset.pattern.permute.xlu0 0
    %647 = vperm.xlu0 %646, %v644
    %v648 = vpop.permute.xlu0 %647
    %v650 = vmul.f32 %v648, %v560
    %652 = vrot.lane.b32.xlu0 %v650, 32
    %v653 = vpop.permute.xlu0 %652
    %v655 = vadd.f32 %v643, %v653
    %657 = vrot.lane.b32.xlu0 %v655, 96
    %v658 = vpop.permute.xlu0 %657
    %660 = vst.msk [vmem:[#allocation2] sm:$0xff] %vm164, %v658
    %662 = vrot.lane.b32.xlu0 %v643, 96
    %v663 = vpop.permute.xlu0 %662
    %s665 = scalar_lea.vmem [#allocation4], 24
    %666 = vst.msk [vmem:[%s665] sm:$0xff] %vm164, %v663
    %v667 = vld [vmem:[#allocation2] sm:$0xff]
    %s668 = scalar_lea.vmem [#allocation3], 32
    %v669 = vld [vmem:[%s668] sm:$0xff]
    %v670 = vld [vmem:[#allocation10] sm:$0xff]
    %v671 = vld [vmem:[#allocation10 + $0x8] sm:$0xff]
    %v672 = vld [vmem:[#allocation10 + $0x10] sm:$0xff]
    %v673 = vld [vmem:[#allocation10 + $0x18] sm:$0xff]
    %v674 = vld [vmem:[%s5] sm:$0x1]
    %v676 = vperm.slane %v674, 0
    %v679 = vsel %vm164, %v667, 0
    %681 = vmatpush.msra.mxu0 0.0
    %682 = vmatpush.msra.mxu0 0.0
    %683 = vmatpush.msra.mxu0 0.0
    %684 = vmatpush.msra.mxu0 0.0
    %685 = vmatpush.msra.mxu0 0.0
    %686 = vmatpush.msra.mxu0 0.0
    %687 = vmatpush.msra.mxu0 0.0
    %688 = vmatpush.msra.mxu0 0.0
    %689 = vmatpush.msra.mxu0 0.0
    %690 = vmatpush.msra.mxu0 0.0
    %691 = vmatpush.msra.mxu0 0.0
    %692 = vmatpush.msra.mxu0 0.0
    %693 = vmatpush.msra.mxu0 %v673
    %694 = vmatpush.msra.mxu0 %v672
    %695 = vmatpush.msra.mxu0 %v671
    %696 = vmatpush.msra.mxu0 %v670
    %697 = vmatmul.f32.gmra.mxu0 %v679
    %v698 = vpop.f32.mrf.mxu0
    %v699 = vadd.f32 %v676, %v698
    %700 = vdwg.mxu0
    %v701 = vadd.f32 %v669, %v699
    %v702 = vxor.u32 %v701, 2147483648
    %v703 = vmul.f32 %v702, 1.442695
    %v704 = vpow.pop %v703
    %v705 = vadd.f32 %v704, 1.0
    %v706 = vrcp.pop %v705
    %v707 = vmul.f32 %v705, %v706
    %v708 = vsub.f32 1.0, %v707
    %v709 = vmul.f32 %v706, %v708
    %v710 = vadd.f32 %v706, %v709
    %vm711 = vweird.f32 %v705
    %vm712 = vweird.f32 %v706
    %vm713 = vmor %vm711, %vm712
    %v714 = vsel %vm713, %v706, %v710
    %v715 = vand.u32 2147483647, %v705
    %vm716 = vcmp.eq.f32.partialorder %v715, 8.507059e+37
    %v717 = vand.u32 %v705, 2147483648
    %v718 = vor.u32 1.1754944e-38, %v717
    %v719 = vsel %vm716, %v718, %v714
    %v720 = vmul.f32 1.0, %v719
    %722 = vrot.lane.b32.xlu0 %v699, 64
    %v723 = vpop.permute.xlu0 %722
    %v725 = vmul.f32 %v720, %v723
    %727 = vrot.lane.b32.xlu0 %v725, 64
    %v728 = vpop.permute.xlu0 %727
    %v730 = vadd.f32 %v669, %v728
    %v731 = vtanh.pop %v730
    %v732 = vsub.f32 1.0, %v720
    %734 = vrot.lane.b32.xlu0 %v731, 96
    %v735 = vpop.permute.xlu0 %734
    %v737 = vmul.f32 %v732, %v735
    %738 = vrot.lane.b32.xlu0 %v667, 32
    %v739 = vpop.permute.xlu0 %738
    %v741 = vmul.f32 %v720, %v739
    %v742 = vadd.f32 %v737, %v741
    %vm743 = vcmp.gt.s32.totalorder %v240, 4
    %v744 = vsel %vm743, 1.0, 0.0
    %746 = vset.pattern.permute.xlu0 0
    %747 = vperm.xlu0 %746, %v744
    %v748 = vpop.permute.xlu0 %747
    %v750 = vmul.f32 %v748, %v742
    %v751 = vsub.f32 1.0, %v744
    %753 = vset.pattern.permute.xlu0 0
    %754 = vperm.xlu0 %753, %v751
    %v755 = vpop.permute.xlu0 %754
    %v757 = vmul.f32 %v755, %v667
    %759 = vrot.lane.b32.xlu0 %v757, 32
    %v760 = vpop.permute.xlu0 %759
    %v762 = vadd.f32 %v750, %v760
    %764 = vrot.lane.b32.xlu0 %v762, 96
    %v765 = vpop.permute.xlu0 %764
    %767 = vst.msk [vmem:[#allocation2] sm:$0xff] %vm164, %v765
    %769 = vrot.lane.b32.xlu0 %v750, 96
    %v770 = vpop.permute.xlu0 %769
    %s772 = scalar_lea.vmem [#allocation4], 32
    %773 = vst.msk [vmem:[%s772] sm:$0xff] %vm164, %v770
    %v774 = vld [vmem:[#allocation2] sm:$0xff]
    %s775 = scalar_lea.vmem [#allocation3], 40
    %v776 = vld [vmem:[%s775] sm:$0xff]
    %v777 = vld [vmem:[#allocation10] sm:$0xff]
    %v778 = vld [vmem:[#allocation10 + $0x8] sm:$0xff]
    %v779 = vld [vmem:[#allocation10 + $0x10] sm:$0xff]
    %v780 = vld [vmem:[#allocation10 + $0x18] sm:$0xff]
    %v781 = vld [vmem:[%s5] sm:$0x1]
    %v783 = vperm.slane %v781, 0
    %v786 = vsel %vm164, %v774, 0
    %788 = vmatpush.msra.mxu0 0.0
    %789 = vmatpush.msra.mxu0 0.0
    %790 = vmatpush.msra.mxu0 0.0
    %791 = vmatpush.msra.mxu0 0.0
    %792 = vmatpush.msra.mxu0 0.0
    %793 = vmatpush.msra.mxu0 0.0
    %794 = vmatpush.msra.mxu0 0.0
    %795 = vmatpush.msra.mxu0 0.0
    %796 = vmatpush.msra.mxu0 0.0
    %797 = vmatpush.msra.mxu0 0.0
    %798 = vmatpush.msra.mxu0 0.0
    %799 = vmatpush.msra.mxu0 0.0
    %800 = vmatpush.msra.mxu0 %v780
    %801 = vmatpush.msra.mxu0 %v779
    %802 = vmatpush.msra.mxu0 %v778
    %803 = vmatpush.msra.mxu0 %v777
    %804 = vmatmul.f32.gmra.mxu0 %v786
    %v805 = vpop.f32.mrf.mxu0
    %v806 = vadd.f32 %v783, %v805
    %807 = vdwg.mxu0
    %v808 = vadd.f32 %v776, %v806
    %v809 = vxor.u32 %v808, 2147483648
    %v810 = vmul.f32 %v809, 1.442695
    %v811 = vpow.pop %v810
    %v812 = vadd.f32 %v811, 1.0
    %v813 = vrcp.pop %v812
    %v814 = vmul.f32 %v812, %v813
    %v815 = vsub.f32 1.0, %v814
    %v816 = vmul.f32 %v813, %v815
    %v817 = vadd.f32 %v813, %v816
    %vm818 = vweird.f32 %v812
    %vm819 = vweird.f32 %v813
    %vm820 = vmor %vm818, %vm819
    %v821 = vsel %vm820, %v813, %v817
    %v822 = vand.u32 2147483647, %v812
    %vm823 = vcmp.eq.f32.partialorder %v822, 8.507059e+37
    %v824 = vand.u32 %v812, 2147483648
    %v825 = vor.u32 1.1754944e-38, %v824
    %v826 = vsel %vm823, %v825, %v821
    %v827 = vmul.f32 1.0, %v826
    %829 = vrot.lane.b32.xlu0 %v806, 64
    %v830 = vpop.permute.xlu0 %829
    %v832 = vmul.f32 %v827, %v830
    %834 = vrot.lane.b32.xlu0 %v832, 64
    %v835 = vpop.permute.xlu0 %834
    %v837 = vadd.f32 %v776, %v835
    %v838 = vtanh.pop %v837
    %v839 = vsub.f32 1.0, %v827
    %841 = vrot.lane.b32.xlu0 %v838, 96
    %v842 = vpop.permute.xlu0 %841
    %v844 = vmul.f32 %v839, %v842
    %845 = vrot.lane.b32.xlu0 %v774, 32
    %v846 = vpop.permute.xlu0 %845
    %v848 = vmul.f32 %v827, %v846
    %v849 = vadd.f32 %v844, %v848
    %vm850 = vcmp.gt.s32.totalorder %v240, 5
    %v851 = vsel %vm850, 1.0, 0.0
    %853 = vset.pattern.permute.xlu0 0
    %854 = vperm.xlu0 %853, %v851
    %v855 = vpop.permute.xlu0 %854
    %v857 = vmul.f32 %v855, %v849
    %v858 = vsub.f32 1.0, %v851
    %860 = vset.pattern.permute.xlu0 0
    %861 = vperm.xlu0 %860, %v858
    %v862 = vpop.permute.xlu0 %861
    %v864 = vmul.f32 %v862, %v774
    %866 = vrot.lane.b32.xlu0 %v864, 32
    %v867 = vpop.permute.xlu0 %866
    %v869 = vadd.f32 %v857, %v867
    %871 = vrot.lane.b32.xlu0 %v869, 96
    %v872 = vpop.permute.xlu0 %871
    %874 = vst.msk [vmem:[#allocation2] sm:$0xff] %vm164, %v872
    %876 = vrot.lane.b32.xlu0 %v857, 96
    %v877 = vpop.permute.xlu0 %876
    %s879 = scalar_lea.vmem [#allocation4], 40
    %880 = vst.msk [vmem:[%s879] sm:$0xff] %vm164, %v877
    %v881 = vld [vmem:[#allocation2] sm:$0xff]
    %s882 = scalar_lea.vmem [#allocation3], 48
    %v883 = vld [vmem:[%s882] sm:$0xff]
    %v884 = vld [vmem:[#allocation10] sm:$0xff]
    %v885 = vld [vmem:[#allocation10 + $0x8] sm:$0xff]
    %v886 = vld [vmem:[#allocation10 + $0x10] sm:$0xff]
    %v887 = vld [vmem:[#allocation10 + $0x18] sm:$0xff]
    %v888 = vld [vmem:[%s5] sm:$0x1]
    %v890 = vperm.slane %v888, 0
    %v893 = vsel %vm164, %v881, 0
    %895 = vmatpush.msra.mxu0 0.0
    %896 = vmatpush.msra.mxu0 0.0
    %897 = vmatpush.msra.mxu0 0.0
    %898 = vmatpush.msra.mxu0 0.0
    %899 = vmatpush.msra.mxu0 0.0
    %900 = vmatpush.msra.mxu0 0.0
    %901 = vmatpush.msra.mxu0 0.0
    %902 = vmatpush.msra.mxu0 0.0
    %903 = vmatpush.msra.mxu0 0.0
    %904 = vmatpush.msra.mxu0 0.0
    %905 = vmatpush.msra.mxu0 0.0
    %906 = vmatpush.msra.mxu0 0.0
    %907 = vmatpush.msra.mxu0 %v887
    %908 = vmatpush.msra.mxu0 %v886
    %909 = vmatpush.msra.mxu0 %v885
    %910 = vmatpush.msra.mxu0 %v884
    %911 = vmatmul.f32.gmra.mxu0 %v893
    %v912 = vpop.f32.mrf.mxu0
    %v913 = vadd.f32 %v890, %v912
    %914 = vdwg.mxu0
    %v915 = vadd.f32 %v883, %v913
    %v916 = vxor.u32 %v915, 2147483648
    %v917 = vmul.f32 %v916, 1.442695
    %v918 = vpow.pop %v917
    %v919 = vadd.f32 %v918, 1.0
    %v920 = vrcp.pop %v919
    %v921 = vmul.f32 %v919, %v920
    %v922 = vsub.f32 1.0, %v921
    %v923 = vmul.f32 %v920, %v922
    %v924 = vadd.f32 %v920, %v923
    %vm925 = vweird.f32 %v919
    %vm926 = vweird.f32 %v920
    %vm927 = vmor %vm925, %vm926
    %v928 = vsel %vm927, %v920, %v924
    %v929 = vand.u32 2147483647, %v919
    %vm930 = vcmp.eq.f32.partialorder %v929, 8.507059e+37
    %v931 = vand.u32 %v919, 2147483648
    %v932 = vor.u32 1.1754944e-38, %v931
    %v933 = vsel %vm930, %v932, %v928
    %v934 = vmul.f32 1.0, %v933
    %936 = vrot.lane.b32.xlu0 %v913, 64
    %v937 = vpop.permute.xlu0 %936
    %v939 = vmul.f32 %v934, %v937
    %941 = vrot.lane.b32.xlu0 %v939, 64
    %v942 = vpop.permute.xlu0 %941
    %v944 = vadd.f32 %v883, %v942
    %v945 = vtanh.pop %v944
    %v946 = vsub.f32 1.0, %v934
    %948 = vrot.lane.b32.xlu0 %v945, 96
    %v949 = vpop.permute.xlu0 %948
    %v951 = vmul.f32 %v946, %v949
    %952 = vrot.lane.b32.xlu0 %v881, 32
    %v953 = vpop.permute.xlu0 %952
    %v955 = vmul.f32 %v934, %v953
    %v956 = vadd.f32 %v951, %v955
    %vm957 = vcmp.gt.s32.totalorder %v240, 6
    %v958 = vsel %vm957, 1.0, 0.0
    %960 = vset.pattern.permute.xlu0 0
    %961 = vperm.xlu0 %960, %v958
    %v962 = vpop.permute.xlu0 %961
    %v964 = vmul.f32 %v962, %v956
    %v965 = vsub.f32 1.0, %v958
    %967 = vset.pattern.permute.xlu0 0
    %968 = vperm.xlu0 %967, %v965
    %v969 = vpop.permute.xlu0 %968
    %v971 = vmul.f32 %v969, %v881
    %973 = vrot.lane.b32.xlu0 %v971, 32
    %v974 = vpop.permute.xlu0 %973
    %v976 = vadd.f32 %v964, %v974
    %978 = vrot.lane.b32.xlu0 %v976, 96
    %v979 = vpop.permute.xlu0 %978
    %981 = vst.msk [vmem:[#allocation2] sm:$0xff] %vm164, %v979
    %983 = vrot.lane.b32.xlu0 %v964, 96
    %v984 = vpop.permute.xlu0 %983
    %s986 = scalar_lea.vmem [#allocation4], 48
    %987 = vst.msk [vmem:[%s986] sm:$0xff] %vm164, %v984
    %v988 = vld [vmem:[#allocation2] sm:$0xff]
    %s989 = scalar_lea.vmem [#allocation3], 56
    %v990 = vld [vmem:[%s989] sm:$0xff]
    %v991 = vld [vmem:[#allocation10] sm:$0xff]
    %v992 = vld [vmem:[#allocation10 + $0x8] sm:$0xff]
    %v993 = vld [vmem:[#allocation10 + $0x10] sm:$0xff]
    %v994 = vld [vmem:[#allocation10 + $0x18] sm:$0xff]
    %v995 = vld [vmem:[%s5] sm:$0x1]
    %v997 = vperm.slane %v995, 0
    %v1000 = vsel %vm164, %v988, 0
    %1002 = vmatpush.msra.mxu0 0.0
    %1003 = vmatpush.msra.mxu0 0.0
    %1004 = vmatpush.msra.mxu0 0.0
    %1005 = vmatpush.msra.mxu0 0.0
    %1006 = vmatpush.msra.mxu0 0.0
    %1007 = vmatpush.msra.mxu0 0.0
    %1008 = vmatpush.msra.mxu0 0.0
    %1009 = vmatpush.msra.mxu0 0.0
    %1010 = vmatpush.msra.mxu0 0.0
    %1011 = vmatpush.msra.mxu0 0.0
    %1012 = vmatpush.msra.mxu0 0.0
    %1013 = vmatpush.msra.mxu0 0.0
    %1014 = vmatpush.msra.mxu0 %v994
    %1015 = vmatpush.msra.mxu0 %v993
    %1016 = vmatpush.msra.mxu0 %v992
    %1017 = vmatpush.msra.mxu0 %v991
    %1018 = vmatmul.f32.gmra.mxu0 %v1000
    %v1019 = vpop.f32.mrf.mxu0
    %v1020 = vadd.f32 %v997, %v1019
    %1021 = vdwg.mxu0
    %v1022 = vadd.f32 %v990, %v1020
    %v1023 = vxor.u32 %v1022, 2147483648
    %v1024 = vmul.f32 %v1023, 1.442695
    %v1025 = vpow.pop %v1024
    %v1026 = vadd.f32 %v1025, 1.0
    %v1027 = vrcp.pop %v1026
    %v1028 = vmul.f32 %v1026, %v1027
    %v1029 = vsub.f32 1.0, %v1028
    %v1030 = vmul.f32 %v1027, %v1029
    %v1031 = vadd.f32 %v1027, %v1030
    %vm1032 = vweird.f32 %v1026
    %vm1033 = vweird.f32 %v1027
    %vm1034 = vmor %vm1032, %vm1033
    %v1035 = vsel %vm1034, %v1027, %v1031
    %v1036 = vand.u32 2147483647, %v1026
    %vm1037 = vcmp.eq.f32.partialorder %v1036, 8.507059e+37
    %v1038 = vand.u32 %v1026, 2147483648
    %v1039 = vor.u32 1.1754944e-38, %v1038
    %v1040 = vsel %vm1037, %v1039, %v1035
    %v1041 = vmul.f32 1.0, %v1040
    %1043 = vrot.lane.b32.xlu0 %v1020, 64
    %v1044 = vpop.permute.xlu0 %1043
    %v1046 = vmul.f32 %v1041, %v1044
    %1048 = vrot.lane.b32.xlu0 %v1046, 64
    %v1049 = vpop.permute.xlu0 %1048
    %v1051 = vadd.f32 %v990, %v1049
    %v1052 = vtanh.pop %v1051
    %v1053 = vsub.f32 1.0, %v1041
    %1055 = vrot.lane.b32.xlu0 %v1052, 96
    %v1056 = vpop.permute.xlu0 %1055
    %v1058 = vmul.f32 %v1053, %v1056
    %1059 = vrot.lane.b32.xlu0 %v988, 32
    %v1060 = vpop.permute.xlu0 %1059
    %v1062 = vmul.f32 %v1041, %v1060
    %v1063 = vadd.f32 %v1058, %v1062
    %vm1064 = vcmp.gt.s32.totalorder %v240, 7
    %v1065 = vsel %vm1064, 1.0, 0.0
    %1067 = vset.pattern.permute.xlu0 0
    %1068 = vperm.xlu0 %1067, %v1065
    %v1069 = vpop.permute.xlu0 %1068
    %v1071 = vmul.f32 %v1069, %v1063
    %v1072 = vsub.f32 1.0, %v1065
    %1074 = vset.pattern.permute.xlu0 0
    %1075 = vperm.xlu0 %1074, %v1072
    %v1076 = vpop.permute.xlu0 %1075
    %v1078 = vmul.f32 %v1076, %v988
    %1080 = vrot.lane.b32.xlu0 %v1078, 32
    %v1081 = vpop.permute.xlu0 %1080
    %v1083 = vadd.f32 %v1071, %v1081
    %1085 = vrot.lane.b32.xlu0 %v1083, 96
    %v1086 = vpop.permute.xlu0 %1085
    %1088 = vst.msk [vmem:[#allocation2] sm:$0xff] %vm164, %v1086
    %1090 = vrot.lane.b32.xlu0 %v1071, 96
    %v1091 = vpop.permute.xlu0 %1090
    %s1093 = scalar_lea.vmem [#allocation4], 56
    %1094 = vst.msk [vmem:[%s1093] sm:$0xff] %vm164, %v1091
    %v1095 = vld [vmem:[#allocation2] sm:$0xff]
    %v1096 = vld [vmem:[#allocation4] sm:$0xff]
    %v1097 = vld [vmem:[#allocation4 + $0x8] sm:$0xff]
    %v1098 = vld [vmem:[#allocation4 + $0x10] sm:$0xff]
    %v1099 = vld [vmem:[#allocation4 + $0x18] sm:$0xff]
    %v1100 = vld [vmem:[#allocation4 + $0x20] sm:$0xff]
    %v1101 = vld [vmem:[#allocation4 + $0x28] sm:$0xff]
    %v1102 = vld [vmem:[#allocation4 + $0x30] sm:$0xff]
    %v1103 = vld [vmem:[#allocation4 + $0x38] sm:$0xff]
    %v1104 = vld [vmem:[#allocation11] sm:$0xff]
    %v1105 = vld [vmem:[#allocation11 + $0x8] sm:$0xff]
    %v1106 = vld [vmem:[#allocation11 + $0x10] sm:$0xff]
    %v1107 = vld [vmem:[#allocation11 + $0x18] sm:$0xff]
    %v1109 = vsel %vm164, %v1096, 0
    %v1112 = vsel %vm164, %v1097, 0
    %v1115 = vsel %vm164, %v1098, 0
    %v1118 = vsel %vm164, %v1099, 0
    %v1121 = vsel %vm164, %v1100, 0
    %v1124 = vsel %vm164, %v1101, 0
    %v1127 = vsel %vm164, %v1102, 0
    %v1130 = vsel %vm164, %v1103, 0
    %1132 = vmatpush.msra.mxu0 0.0
    %1133 = vmatpush.msra.mxu0 0.0
    %1134 = vmatpush.msra.mxu0 0.0
    %1135 = vmatpush.msra.mxu0 0.0
    %1136 = vmatpush.msra.mxu0 0.0
    %1137 = vmatpush.msra.mxu0 0.0
    %1138 = vmatpush.msra.mxu0 0.0
    %1139 = vmatpush.msra.mxu0 0.0
    %1140 = vmatpush.msra.mxu0 0.0
    %1141 = vmatpush.msra.mxu0 0.0
    %1142 = vmatpush.msra.mxu0 0.0
    %1143 = vmatpush.msra.mxu0 0.0
    %1144 = vmatpush.msra.mxu0 %v1107
    %1145 = vmatpush.msra.mxu0 %v1106
    %1146 = vmatpush.msra.mxu0 %v1105
    %1147 = vmatpush.msra.mxu0 %v1104
    %1148 = vmatmul.f32.gmra.mxu0 %v1109
    %v1149 = vpop.f32.mrf.mxu0
    %v1150 = vadd.f32 0.0, %v1149
    %1151 = vmatmul.f32.gmra.mxu0 %v1112
    %v1152 = vpop.f32.mrf.mxu0
    %v1153 = vadd.f32 0.0, %v1152
    %1154 = vmatmul.f32.gmra.mxu0 %v1115
    %v1155 = vpop.f32.mrf.mxu0
    %v1156 = vadd.f32 0.0, %v1155
    %1157 = vmatmul.f32.gmra.mxu0 %v1118
    %v1158 = vpop.f32.mrf.mxu0
    %v1159 = vadd.f32 0.0, %v1158
    %1160 = vmatmul.f32.gmra.mxu0 %v1121
    %v1161 = vpop.f32.mrf.mxu0
    %v1162 = vadd.f32 0.0, %v1161
    %1163 = vmatmul.f32.gmra.mxu0 %v1124
    %v1164 = vpop.f32.mrf.mxu0
    %v1165 = vadd.f32 0.0, %v1164
    %1166 = vmatmul.f32.gmra.mxu0 %v1127
    %v1167 = vpop.f32.mrf.mxu0
    %v1168 = vadd.f32 0.0, %v1167
    %1169 = vmatmul.f32.gmra.mxu0 %v1130
    %v1170 = vpop.f32.mrf.mxu0
    %v1171 = vadd.f32 0.0, %v1170
    %1172 = vdwg.mxu0
    %v1173 = vld [vmem:[#allocation13] sm:$0xff]
    %v1174 = vld [vmem:[#allocation13 + $0x8] sm:$0xff]
    %v1175 = vld [vmem:[#allocation13 + $0x10] sm:$0xff]
    %v1176 = vld [vmem:[#allocation13 + $0x18] sm:$0xff]
    %v1178 = vsel %vm164, %v1095, 0
    %1180 = vmatpush.msra.mxu0 0.0
    %1181 = vmatpush.msra.mxu0 0.0
    %1182 = vmatpush.msra.mxu0 0.0
    %1183 = vmatpush.msra.mxu0 0.0
    %1184 = vmatpush.msra.mxu0 0.0
    %1185 = vmatpush.msra.mxu0 0.0
    %1186 = vmatpush.msra.mxu0 0.0
    %1187 = vmatpush.msra.mxu0 0.0
    %1188 = vmatpush.msra.mxu0 0.0
    %1189 = vmatpush.msra.mxu0 0.0
    %1190 = vmatpush.msra.mxu0 0.0
    %1191 = vmatpush.msra.mxu0 0.0
    %1192 = vmatpush.msra.mxu0 %v1176
    %1193 = vmatpush.msra.mxu0 %v1175
    %1194 = vmatpush.msra.mxu0 %v1174
    %1195 = vmatpush.msra.mxu0 %v1173
    %1196 = vmatmul.f32.gmra.mxu0 %v1178
    %v1197 = vpop.f32.mrf.mxu0
    %v1198 = vadd.f32 0.0, %v1197
    %1199 = vdwg.mxu0
    %v1200 = vadd.f32 %v1150, %v1198
    %v1201 = vadd.f32 %v1153, %v1198
    %v1202 = vadd.f32 %v1156, %v1198
    %v1203 = vadd.f32 %v1159, %v1198
    %v1204 = vadd.f32 %v1162, %v1198
    %v1205 = vadd.f32 %v1165, %v1198
    %v1206 = vadd.f32 %v1168, %v1198
    %v1207 = vadd.f32 %v1171, %v1198
    %v1208 = vxor.u32 %v1200, 2147483648
    %v1209 = vxor.u32 %v1201, 2147483648
    %v1210 = vxor.u32 %v1202, 2147483648
    %v1211 = vxor.u32 %v1203, 2147483648
    %v1212 = vxor.u32 %v1204, 2147483648
    %v1213 = vxor.u32 %v1205, 2147483648
    %v1214 = vxor.u32 %v1206, 2147483648
    %v1215 = vxor.u32 %v1207, 2147483648
    %v1216 = vmul.f32 %v1208, 1.442695
    %v1217 = vpow.pop %v1216
    %v1218 = vmul.f32 %v1209, 1.442695
    %v1219 = vpow.pop %v1218
    %v1220 = vmul.f32 %v1210, 1.442695
    %v1221 = vpow.pop %v1220
    %v1222 = vmul.f32 %v1211, 1.442695
    %v1223 = vpow.pop %v1222
    %v1224 = vmul.f32 %v1212, 1.442695
    %v1225 = vpow.pop %v1224
    %v1226 = vmul.f32 %v1213, 1.442695
    %v1227 = vpow.pop %v1226
    %v1228 = vmul.f32 %v1214, 1.442695
    %v1229 = vpow.pop %v1228
    %v1230 = vmul.f32 %v1215, 1.442695
    %v1231 = vpow.pop %v1230
    %v1232 = vadd.f32 %v1217, 1.0
    %v1233 = vadd.f32 %v1219, 1.0
    %v1234 = vadd.f32 %v1221, 1.0
    %v1235 = vadd.f32 %v1223, 1.0
    %v1236 = vadd.f32 %v1225, 1.0
    %v1237 = vadd.f32 %v1227, 1.0
    %v1238 = vadd.f32 %v1229, 1.0
    %v1239 = vadd.f32 %v1231, 1.0
    %v1240 = vrcp.pop %v1232
    %v1241 = vmul.f32 %v1232, %v1240
    %v1242 = vsub.f32 1.0, %v1241
    %v1243 = vmul.f32 %v1240, %v1242
    %v1244 = vadd.f32 %v1240, %v1243
    %vm1245 = vweird.f32 %v1232
    %vm1246 = vweird.f32 %v1240
    %vm1247 = vmor %vm1245, %vm1246
    %v1248 = vsel %vm1247, %v1240, %v1244
    %v1249 = vand.u32 2147483647, %v1232
    %vm1250 = vcmp.eq.f32.partialorder %v1249, 8.507059e+37
    %v1251 = vand.u32 %v1232, 2147483648
    %v1252 = vor.u32 1.1754944e-38, %v1251
    %v1253 = vsel %vm1250, %v1252, %v1248
    %v1254 = vmul.f32 1.0, %v1253
    %v1255 = vrcp.pop %v1233
    %v1256 = vmul.f32 %v1233, %v1255
    %v1257 = vsub.f32 1.0, %v1256
    %v1258 = vmul.f32 %v1255, %v1257
    %v1259 = vadd.f32 %v1255, %v1258
    %vm1260 = vweird.f32 %v1233
    %vm1261 = vweird.f32 %v1255
    %vm1262 = vmor %vm1260, %vm1261
    %v1263 = vsel %vm1262, %v1255, %v1259
    %v1264 = vand.u32 2147483647, %v1233
    %vm1265 = vcmp.eq.f32.partialorder %v1264, 8.507059e+37
    %v1266 = vand.u32 %v1233, 2147483648
    %v1267 = vor.u32 1.1754944e-38, %v1266
    %v1268 = vsel %vm1265, %v1267, %v1263
    %v1269 = vmul.f32 1.0, %v1268
    %v1270 = vrcp.pop %v1234
    %v1271 = vmul.f32 %v1234, %v1270
    %v1272 = vsub.f32 1.0, %v1271
    %v1273 = vmul.f32 %v1270, %v1272
    %v1274 = vadd.f32 %v1270, %v1273
    %vm1275 = vweird.f32 %v1234
    %vm1276 = vweird.f32 %v1270
    %vm1277 = vmor %vm1275, %vm1276
    %v1278 = vsel %vm1277, %v1270, %v1274
    %v1279 = vand.u32 2147483647, %v1234
    %vm1280 = vcmp.eq.f32.partialorder %v1279, 8.507059e+37
    %v1281 = vand.u32 %v1234, 2147483648
    %v1282 = vor.u32 1.1754944e-38, %v1281
    %v1283 = vsel %vm1280, %v1282, %v1278
    %v1284 = vmul.f32 1.0, %v1283
    %v1285 = vrcp.pop %v1235
    %v1286 = vmul.f32 %v1235, %v1285
    %v1287 = vsub.f32 1.0, %v1286
    %v1288 = vmul.f32 %v1285, %v1287
    %v1289 = vadd.f32 %v1285, %v1288
    %vm1290 = vweird.f32 %v1235
    %vm1291 = vweird.f32 %v1285
    %vm1292 = vmor %vm1290, %vm1291
    %v1293 = vsel %vm1292, %v1285, %v1289
    %v1294 = vand.u32 2147483647, %v1235
    %vm1295 = vcmp.eq.f32.partialorder %v1294, 8.507059e+37
    %v1296 = vand.u32 %v1235, 2147483648
    %v1297 = vor.u32 1.1754944e-38, %v1296
    %v1298 = vsel %vm1295, %v1297, %v1293
    %v1299 = vmul.f32 1.0, %v1298
    %v1300 = vrcp.pop %v1236
    %v1301 = vmul.f32 %v1236, %v1300
    %v1302 = vsub.f32 1.0, %v1301
    %v1303 = vmul.f32 %v1300, %v1302
    %v1304 = vadd.f32 %v1300, %v1303
    %vm1305 = vweird.f32 %v1236
    %vm1306 = vweird.f32 %v1300
    %vm1307 = vmor %vm1305, %vm1306
    %v1308 = vsel %vm1307, %v1300, %v1304
    %v1309 = vand.u32 2147483647, %v1236
    %vm1310 = vcmp.eq.f32.partialorder %v1309, 8.507059e+37
    %v1311 = vand.u32 %v1236, 2147483648
    %v1312 = vor.u32 1.1754944e-38, %v1311
    %v1313 = vsel %vm1310, %v1312, %v1308
    %v1314 = vmul.f32 1.0, %v1313
    %v1315 = vrcp.pop %v1237
    %v1316 = vmul.f32 %v1237, %v1315
    %v1317 = vsub.f32 1.0, %v1316
    %v1318 = vmul.f32 %v1315, %v1317
    %v1319 = vadd.f32 %v1315, %v1318
    %vm1320 = vweird.f32 %v1237
    %vm1321 = vweird.f32 %v1315
    %vm1322 = vmor %vm1320, %vm1321
    %v1323 = vsel %vm1322, %v1315, %v1319
    %v1324 = vand.u32 2147483647, %v1237
    %vm1325 = vcmp.eq.f32.partialorder %v1324, 8.507059e+37
    %v1326 = vand.u32 %v1237, 2147483648
    %v1327 = vor.u32 1.1754944e-38, %v1326
    %v1328 = vsel %vm1325, %v1327, %v1323
    %v1329 = vmul.f32 1.0, %v1328
    %v1330 = vrcp.pop %v1238
    %v1331 = vmul.f32 %v1238, %v1330
    %v1332 = vsub.f32 1.0, %v1331
    %v1333 = vmul.f32 %v1330, %v1332
    %v1334 = vadd.f32 %v1330, %v1333
    %vm1335 = vweird.f32 %v1238
    %vm1336 = vweird.f32 %v1330
    %vm1337 = vmor %vm1335, %vm1336
    %v1338 = vsel %vm1337, %v1330, %v1334
    %v1339 = vand.u32 2147483647, %v1238
    %vm1340 = vcmp.eq.f32.partialorder %v1339, 8.507059e+37
    %v1341 = vand.u32 %v1238, 2147483648
    %v1342 = vor.u32 1.1754944e-38, %v1341
    %v1343 = vsel %vm1340, %v1342, %v1338
    %v1344 = vmul.f32 1.0, %v1343
    %v1345 = vrcp.pop %v1239
    %v1346 = vmul.f32 %v1239, %v1345
    %v1347 = vsub.f32 1.0, %v1346
    %v1348 = vmul.f32 %v1345, %v1347
    %v1349 = vadd.f32 %v1345, %v1348
    %vm1350 = vweird.f32 %v1239
    %vm1351 = vweird.f32 %v1345
    %vm1352 = vmor %vm1350, %vm1351
    %v1353 = vsel %vm1352, %v1345, %v1349
    %v1354 = vand.u32 2147483647, %v1239
    %vm1355 = vcmp.eq.f32.partialorder %v1354, 8.507059e+37
    %v1356 = vand.u32 %v1239, 2147483648
    %v1357 = vor.u32 1.1754944e-38, %v1356
    %v1358 = vsel %vm1355, %v1357, %v1353
    %v1359 = vmul.f32 1.0, %v1358
    %v1360 = vld [vmem:[%s8] sm:$0x1]
    %v1362 = vperm.slane %v1360, 0
    %v1364 = vmul.f32 %v1254, %v1362
    %v1365 = vmul.f32 %v1269, %v1362
    %v1366 = vmul.f32 %v1284, %v1362
    %v1367 = vmul.f32 %v1299, %v1362
    %v1368 = vmul.f32 %v1314, %v1362
    %v1369 = vmul.f32 %v1329, %v1362
    %v1370 = vmul.f32 %v1344, %v1362
    %v1371 = vmul.f32 %v1359, %v1362
    %v1372 = vsel %vm164, %v1364, 0.0
    %1373 = vadd.xlane.f32.xlu0 %v1372
    %v1374 = vpop.xlane.xlu0 %1373
    %v1375 = vsel %vm164, %v1365, 0.0
    %1376 = vadd.xlane.f32.xlu0 %v1375
    %v1377 = vpop.xlane.xlu0 %1376
    %v1378 = vsel %vm164, %v1366, 0.0
    %1379 = vadd.xlane.f32.xlu0 %v1378
    %v1380 = vpop.xlane.xlu0 %1379
    %v1381 = vsel %vm164, %v1367, 0.0
    %1382 = vadd.xlane.f32.xlu0 %v1381
    %v1383 = vpop.xlane.xlu0 %1382
    %v1384 = vsel %vm164, %v1368, 0.0
    %1385 = vadd.xlane.f32.xlu0 %v1384
    %v1386 = vpop.xlane.xlu0 %1385
    %v1387 = vsel %vm164, %v1369, 0.0
    %1388 = vadd.xlane.f32.xlu0 %v1387
    %v1389 = vpop.xlane.xlu0 %1388
    %v1390 = vsel %vm164, %v1370, 0.0
    %1391 = vadd.xlane.f32.xlu0 %v1390
    %v1392 = vpop.xlane.xlu0 %1391
    %v1393 = vsel %vm164, %v1371, 0.0
    %1394 = vadd.xlane.f32.xlu0 %v1393
    %v1395 = vpop.xlane.xlu0 %1394
    %v1396 = vmul.f32 %v1374, %v1096
    %v1397 = vmul.f32 %v1377, %v1097
    %v1398 = vmul.f32 %v1380, %v1098
    %v1399 = vmul.f32 %v1383, %v1099
    %v1400 = vmul.f32 %v1386, %v1100
    %v1401 = vmul.f32 %v1389, %v1101
    %v1402 = vmul.f32 %v1392, %v1102
    %v1403 = vmul.f32 %v1395, %v1103
    %v1404 = vsel %vm164, %v1396, 0.0
    %v1405 = vsel %vm164, %v1397, 0.0
    %v1406 = vadd.f32 %v1404, %v1405
    %v1407 = vsel %vm164, %v1398, 0.0
    %v1408 = vadd.f32 %v1406, %v1407
    %v1409 = vsel %vm164, %v1399, 0.0
    %v1410 = vadd.f32 %v1408, %v1409
    %v1411 = vsel %vm164, %v1400, 0.0
    %v1412 = vadd.f32 %v1410, %v1411
    %v1413 = vsel %vm164, %v1401, 0.0
    %v1414 = vadd.f32 %v1412, %v1413
    %v1415 = vsel %vm164, %v1402, 0.0
    %v1416 = vadd.f32 %v1414, %v1415
    %v1417 = vsel %vm164, %v1403, 0.0
    %v1418 = vadd.f32 %v1416, %v1417
    %v1419 = vld [vmem:[#allocation14] sm:$0xff]
    %v1420 = vld [vmem:[#allocation14 + $0x8] sm:$0xff]
    %v1421 = vld [vmem:[#allocation14 + $0x10] sm:$0xff]
    %v1422 = vld [vmem:[#allocation14 + $0x18] sm:$0xff]
    %v1423 = vld [vmem:[#allocation16] sm:$0xff]
    %v1424 = vld [vmem:[#allocation16 + $0x8] sm:$0xff]
    %v1425 = vld [vmem:[#allocation16 + $0x10] sm:$0xff]
    %v1426 = vld [vmem:[#allocation16 + $0x18] sm:$0xff]
    %1427 = vmatpush.msra.mxu0 0.0
    %1428 = vmatpush.msra.mxu0 0.0
    %1429 = vmatpush.msra.mxu0 0.0
    %1430 = vmatpush.msra.mxu0 0.0
    %1431 = vmatpush.msra.mxu0 0.0
    %1432 = vmatpush.msra.mxu0 0.0
    %1433 = vmatpush.msra.mxu0 0.0
    %1434 = vmatpush.msra.mxu0 0.0
    %1435 = vmatpush.msra.mxu0 0.0
    %1436 = vmatpush.msra.mxu0 0.0
    %1437 = vmatpush.msra.mxu0 0.0
    %1438 = vmatpush.msra.mxu0 0.0
    %1439 = vmatpush.msra.mxu0 %v1426
    %1440 = vmatpush.msra.mxu0 %v1425
    %1441 = vmatpush.msra.mxu0 %v1424
    %1442 = vmatpush.msra.mxu0 %v1423
    %1443 = vmatmul.f32.gmra.mxu0 %v1178
    %v1444 = vpop.f32.mrf.mxu0
    %v1445 = vadd.f32 0.0, %v1444
    %1446 = vdwg.mxu0
    %v1448 = vsel %vm164, %v1418, 0
    %1450 = vmatpush.msra.mxu0 0.0
    %1451 = vmatpush.msra.mxu0 0.0
    %1452 = vmatpush.msra.mxu0 0.0
    %1453 = vmatpush.msra.mxu0 0.0
    %1454 = vmatpush.msra.mxu0 0.0
    %1455 = vmatpush.msra.mxu0 0.0
    %1456 = vmatpush.msra.mxu0 0.0
    %1457 = vmatpush.msra.mxu0 0.0
    %1458 = vmatpush.msra.mxu0 0.0
    %1459 = vmatpush.msra.mxu0 0.0
    %1460 = vmatpush.msra.mxu0 0.0
    %1461 = vmatpush.msra.mxu0 0.0
    %1462 = vmatpush.msra.mxu0 %v1422
    %1463 = vmatpush.msra.mxu0 %v1421
    %1464 = vmatpush.msra.mxu0 %v1420
    %1465 = vmatpush.msra.mxu0 %v1419
    %1466 = vmatmul.f32.gmra.mxu0 %v1448
    %v1467 = vpop.f32.mrf.mxu0
    %v1468 = vadd.f32 %v1445, %v1467
    %1469 = vdwg.mxu0
    %1470 = vst.msk [vmem:[#allocation17] sm:$0xff] %vm164, %v1468
    // Predicated region
    $region74: #{tpu_custom_call.1} parent=1 // pred_check
      _
    $region75: #{tpu_custom_call.1} parent=1 // pred_check_branch
      %1472 = sbr.rel (0) target = $region77
    $region76: #{tpu_custom_call.1} parent=1 // pred_region
      %1474 = vsyncadd [#allocation7], 0
      %s1476 = sshll.u32 [#allocation17], 4
      %s1477 = int_to_ptr.vmem [resolvable:$true] %s1476
      %s1478 = sshll.u32 %s11, 4
      %s1479 = int_to_ptr.hbm [resolvable:$true] %s1478
      %1481 = dma.vmem_to_hbm [thread:$0]  %s1477, 128, %s1479, [#allocation7]
    $region77: #{tpu_custom_call.1} parent=1 // pred_fallthru
      _
    // Predicated region
    $region78: #{tpu_custom_call.1} parent=1 // pred_check
      _
    $region79: #{tpu_custom_call.1} parent=1 // pred_check_branch
      %1483 = sbr.rel (0) target = $region81
    $region80: #{tpu_custom_call.1} parent=1 // pred_region
      %1485 = dma.done [#allocation7], 128
    $region81: #{tpu_custom_call.1} parent=1 // pred_fallthru
      _
    %1486 = vsyncpa [#allocation6], 1
    %1487 = vsyncpa [#allocation9], 1
    %1488 = vsyncpa [#allocation12], 1
    %1489 = vsyncpa [#allocation15], 1
    %1490 = vsyncpa [#allocation7], 1

</llo_original>
